<compile_context>
chip_gen: v6e
topology: v6e:2x2x1
jax: 0.10.0
libtpu: 0.0.40
codegen_flags: <defaults>
</compile_context>

<pallas_src>
from math import sqrt

import jax
import jax.numpy as jnp
from jax.experimental import pallas as pl
from jax.experimental.pallas import tpu as pltpu

_LANE = 128
_SUBLANE = 8


def _round_up(v, m):
    return ((v + m - 1) // m) * m


def _rff_inr_kernel(x_ref, b2_ref, w_ref, bias_ref, o_ref):
    # x_ref:    (TM, dim_in+1)      VMEM  coordinate tile with appended ones column
    # b2_ref:   (dim_in+1, ff_dim)  VMEM  [2*pi*[B|B] ; phase row]
    # w_ref:    (ff_dim, dim_out)   VMEM  scale * W^T
    # bias_ref: (1, dim_out)        VMEM  scale * b + shift
    # proj already contains the +pi/2 phase for the cos half (ones column x phase row).
    proj = jnp.dot(x_ref[...], b2_ref[...],
                   preferred_element_type=jnp.float32,
                   precision=jax.lax.Precision.HIGHEST)
    feats = jnp.sin(proj)                       # full-lane (TM, ff_dim) sin; cos == sin(+pi/2)
    y = jnp.dot(feats, w_ref[...],
                preferred_element_type=jnp.float32,
                precision=jax.lax.Precision.HIGHEST)
    y = y + bias_ref[...]
    # TODO(synk): if further INR layers follow, fuse them here (their weights are a
    # few KB and VMEM-resident) to keep the narrow (TM, dim_out) activation out of HBM.
    o_ref[...] = jnp.maximum(y, 0.0).astype(o_ref.dtype)


def _vmem_estimate_bytes(tile_m, dim_in_aug, ff_dim, dim_out):
    """Rough scoped-VMEM need: double-buffered I/O tiles + resident weights + temporaries."""
    f32 = 4
    x_buf = tile_m * _round_up(dim_in_aug, _LANE) * f32
    out_buf = tile_m * _round_up(dim_out, _LANE) * f32
    w_bufs = (_round_up(dim_in_aug, _SUBLANE) * _round_up(ff_dim, _LANE)
              + _round_up(ff_dim, _SUBLANE) * _round_up(dim_out, _LANE)
              + _SUBLANE * _round_up(dim_out, _LANE)) * f32
    temps = 2 * tile_m * _round_up(ff_dim, _LANE) * f32      # proj + feats
    return 2 * (x_buf + out_buf + w_bufs) + temps + (4 << 20)  # +4 MiB headroom


def rff_inr_layer_first(x, B, W_t, bias, scale=1.0, shift=0.0, *, tile_m=2048):
    """x: (batch, num_points, dim_in) float32 -> (batch, num_points, dim_out)."""
    batch, n_pts, dim_in = x.shape
    ff_half = B.shape[1]
    ff_dim = 2 * ff_half
    dim_out = W_t.shape[1]
    assert W_t.shape[0] == ff_dim

    # --- parameter prep (constant folds; tiny, done outside the kernel) ---
    b2 = (2.0 * jnp.pi) * jnp.concatenate([B, B], axis=1)              # (dim_in, ff_dim)
    phase = jnp.concatenate(
        [jnp.zeros((1, ff_half), jnp.float32),
         jnp.full((1, ff_half), 0.5 * jnp.pi, jnp.float32)], axis=1)   # (1, ff_dim)
    b2_aug = jnp.concatenate([b2.astype(jnp.float32), phase], axis=0)  # (dim_in+1, ff_dim)
    w_s = jnp.asarray(scale, jnp.float32) * W_t.astype(jnp.float32)    # (ff_dim, dim_out)
    bias_f = (jnp.asarray(scale, jnp.float32) * bias.astype(jnp.float32)
              + jnp.asarray(shift, jnp.float32)).reshape(1, dim_out)   # (1, dim_out)

    # --- adaptive tiling: big tiles for large M, no wasted rows for small M,
    #     and >= 2 grid steps when possible so both v7x TensorCores get work ---
    M = batch * n_pts
    m8 = _round_up(M, _SUBLANE)
    tile_cap = max(_SUBLANE, min(tile_m, m8))
    n_steps = pl.cdiv(m8, tile_cap)
    if n_steps < 2 and m8 >= 2 * _SUBLANE:
        n_steps = 2
    tile_m_eff = _round_up(pl.cdiv(m8, n_steps), _SUBLANE)
    grid_m = pl.cdiv(M, tile_m_eff)
    M_pad = grid_m * tile_m_eff

    # --- flatten, pad M, append ones column (drives the phase row on the MXU) ---
    x_flat = x.reshape(M, dim_in).astype(jnp.float32)
    if M_pad != M:
        x_flat = jnp.pad(x_flat, ((0, M_pad - M), (0, 0)))
    x_aug = jnp.concatenate([x_flat, jnp.ones((M_pad, 1), jnp.float32)], axis=1)

    dim_in_aug = dim_in + 1
    vmem_limit = int(min(max(_vmem_estimate_bytes(tile_m_eff, dim_in_aug, ff_dim, dim_out),
                             32 << 20), 60 << 20))

    out = pl.pallas_call(
        _rff_inr_kernel,
        out_shape=jax.ShapeDtypeStruct((M_pad, dim_out), jnp.float32),
        grid=(grid_m,),
        in_specs=[
            pl.BlockSpec((tile_m_eff, dim_in_aug), lambda i: (i, 0)),  # x tile (+ones col)
            pl.BlockSpec((dim_in_aug, ff_dim), lambda i: (0, 0)),      # [2*pi*[B|B]; phase]
            pl.BlockSpec((ff_dim, dim_out), lambda i: (0, 0)),         # scale*W^T (resident)
            pl.BlockSpec((1, dim_out), lambda i: (0, 0)),              # folded bias
        ],
        out_specs=pl.BlockSpec((tile_m_eff, dim_out), lambda i: (i, 0)),
        compiler_params=pltpu.CompilerParams(
            dimension_semantics=("parallel",),
            vmem_limit_bytes=vmem_limit),
    )(x_aug, b2_aug, w_s, bias_f)

    if M_pad != M:
        out = out[:M]
    return out.reshape(batch, n_pts, dim_out)


def reference(x, B, W_t, bias, scale=1.0, shift=0.0):
    # Full-precision matmuls so the reference tracks true f32 math (PyTorch CPU/GPU).
    hp = jax.lax.Precision.HIGHEST
    proj = 2.0 * jnp.pi * jnp.dot(x, B, precision=hp)
    feats = jnp.concatenate([jnp.sin(proj), jnp.cos(proj)], axis=-1)
    y = jnp.dot(feats, W_t, precision=hp) + bias
    return jnp.maximum(scale * y + shift, 0.0)


if __name__ == "__main__":
    # Module hyperparameters (small, consistent with the forward pass).
    dim_in, dim_out, ff_dim, sigma = 2, 32, 128, 10.0
    batch, n_pts = 2, 64

    key = jax.random.PRNGKey(0)
    k_b, k_w, k_bias, k_x = jax.random.split(key, 4)

    # Deterministic parameter init (shapes from __init__):
    #   RandomFourierFeatures projection: B ~ N(0, sigma^2), (dim_in, ff_dim//2)
    B = sigma * jax.random.normal(k_b, (dim_in, ff_dim // 2), dtype=jnp.float32)
    #   nn.Linear(ff_dim, dim_out): uniform(-1/sqrt(ff_dim), 1/sqrt(ff_dim))
    bound = 1.0 / sqrt(ff_dim)
    W = jax.random.uniform(k_w, (dim_out, ff_dim), minval=-bound, maxval=bound,
                           dtype=jnp.float32)
    bias = jax.random.uniform(k_bias, (dim_out,), minval=-bound, maxval=bound,
                              dtype=jnp.float32)
    W_t = W.T  # (ff_dim, dim_out) for kernel-side matmul

    # Input coordinates: [batch, num_points, dim_in]
    x = jax.random.uniform(k_x, (batch, n_pts, dim_in), minval=-1.0, maxval=1.0,
                           dtype=jnp.float32)

    # Exercises scale/shift folding, the phase-via-ones-column path, and the
    # adaptive small-M tiling (M=128 -> 2 grid steps of 64 rows, no padded rows).
    out = rff_inr_layer_first(x, B, W_t, bias, scale=1.5, shift=0.25)
    out = jax.block_until_ready(out)

    ref = reference(x, B, W_t, bias, scale=1.5, shift=0.25)
    assert out.shape == (batch, n_pts, dim_out)
    assert jnp.allclose(out, ref, atol=1e-4, rtol=1e-4), \
        f"max abs err {jnp.max(jnp.abs(out - ref))}"
    print("KERNEL_OK")
</pallas_src>

<mosaic_0001>
module attributes {stable_mosaic.version = 11 : i64} {
  func.func @_rff_inr_kernel(%arg0: i32, %arg1: memref<64x3xf32, #tpu.memory_space<vmem>>, %arg2: memref<3x128xf32, #tpu.memory_space<vmem>>, %arg3: memref<128x32xf32, #tpu.memory_space<vmem>>, %arg4: memref<1x32xf32, #tpu.memory_space<vmem>>, %arg5: memref<64x32xf32, #tpu.memory_space<vmem>>) attributes {dimension_semantics = [#tpu.dimension_semantics<parallel>], iteration_bounds = array<i64: 2>, scalar_prefetch = 0 : i64, scratch_operands = 0 : i64, tpu.core_type = #tpu.core_type<tc>, window_params = [{transform_indices = @transform_0, window_bounds = array<i64: 64, 3>}, {pipeline_mode = #tpu.pipeline_mode<synchronous>, transform_indices = @transform_1, window_bounds = array<i64: 3, 128>}, {pipeline_mode = #tpu.pipeline_mode<synchronous>, transform_indices = @transform_2, window_bounds = array<i64: 128, 32>}, {pipeline_mode = #tpu.pipeline_mode<synchronous>, transform_indices = @transform_3, window_bounds = array<i64: 1, 32>}, {transform_indices = @transform_4, window_bounds = array<i64: 64, 32>}]} {
    %c0 = arith.constant 0 : index
    %c0_0 = arith.constant 0 : index
    %0 = vector.load %arg1[%c0, %c0_0] : memref<64x3xf32, #tpu.memory_space<vmem>>, vector<64x3xf32>
    %c0_1 = arith.constant 0 : index
    %c0_2 = arith.constant 0 : index
    %1 = vector.load %arg2[%c0_1, %c0_2] : memref<3x128xf32, #tpu.memory_space<vmem>>, vector<3x128xf32>
    %cst = arith.constant dense<0.000000e+00> : vector<64x128xf32>
    %2 = tpu.matmul %0, %1, %cst {dimension_numbers = #tpu.dot_dimension_numbers<[1], [0], [0], [1], [0, 0, 1, 1], [], []>, precision = #tpu.contract_precision<fp32>} : vector<64x3xf32>, vector<3x128xf32>, vector<64x128xf32> -> vector<64x128xf32>
    %3 = math.sin %2 : vector<64x128xf32>
    %c0_3 = arith.constant 0 : index
    %c0_4 = arith.constant 0 : index
    %4 = vector.load %arg3[%c0_3, %c0_4] : memref<128x32xf32, #tpu.memory_space<vmem>>, vector<128x32xf32>
    %cst_5 = arith.constant dense<0.000000e+00> : vector<64x32xf32>
    %5 = tpu.matmul %3, %4, %cst_5 {dimension_numbers = #tpu.dot_dimension_numbers<[1], [0], [0], [1], [0, 0, 1, 1], [], []>, precision = #tpu.contract_precision<fp32>} : vector<64x128xf32>, vector<128x32xf32>, vector<64x32xf32> -> vector<64x32xf32>
    %c0_6 = arith.constant 0 : index
    %c0_7 = arith.constant 0 : index
    %6 = vector.load %arg4[%c0_6, %c0_7] : memref<1x32xf32, #tpu.memory_space<vmem>>, vector<1x32xf32>
    %7 = vector.broadcast %6 : vector<1x32xf32> to vector<64x32xf32>
    %8 = arith.addf %5, %7 : vector<64x32xf32>
    %cst_8 = arith.constant 0.000000e+00 : f32
    %9 = vector.broadcast %cst_8 : f32 to vector<64x32xf32>
    %10 = arith.maximumf %8, %9 : vector<64x32xf32>
    %c0_9 = arith.constant 0 : index
    %c0_10 = arith.constant 0 : index
    %11 = vector.load %arg5[%c0_9, %c0_10] : memref<64x32xf32, #tpu.memory_space<vmem>>, vector<64x32xf32>
    tpu.vector_store %arg5[%c0_9, %c0_10], %10 {strides = array<i32>} : memref<64x32xf32, #tpu.memory_space<vmem>>, vector<64x32xf32>,
    return
  }
  func.func @transform_0(%arg0: i32) -> (i32, i32) {
    %c0_i32 = arith.constant 0 : i32
    %c0_i32_0 = arith.constant 0 : i32
    return %arg0, %c0_i32 : i32, i32
  }
  func.func @transform_1(%arg0: i32) -> (i32, i32) {
    %c0_i32 = arith.constant 0 : i32
    %c0_i32_0 = arith.constant 0 : i32
    %c0_i32_1 = arith.constant 0 : i32
    return %c0_i32, %c0_i32_0 : i32, i32
  }
  func.func @transform_2(%arg0: i32) -> (i32, i32) {
    %c0_i32 = arith.constant 0 : i32
    %c0_i32_0 = arith.constant 0 : i32
    %c0_i32_1 = arith.constant 0 : i32
    return %c0_i32, %c0_i32_0 : i32, i32
  }
  func.func @transform_3(%arg0: i32) -> (i32, i32) {
    %c0_i32 = arith.constant 0 : i32
    %c0_i32_0 = arith.constant 0 : i32
    %c0_i32_1 = arith.constant 0 : i32
    return %c0_i32, %c0_i32_0 : i32, i32
  }
  func.func @transform_4(%arg0: i32) -> (i32, i32) {
    %c0_i32 = arith.constant 0 : i32
    %c0_i32_0 = arith.constant 0 : i32
    return %arg0, %c0_i32 : i32, i32
  }
}

</mosaic_0001>

<llo_original>
// kernel: tpu_custom_call.1
$region0: #{tpu_custom_call.1}
  #allocation0 [shape = 'u32[]', space=smem, size = 0x4, offset = 0x4, fixed_abs, tag = 'smem constant byte address 0x4 - core index']
  #allocation1 [shape = 'u32[144,128]{1,0:T(1,128)}', space=vmem, size = 0x12000, scoped, tag = 'internal scratch']
  %s0 = inlined_call_operand.vmem [shape: f32[128,3], index: 0, kind: input, shape index: {}]
  %s1 = inlined_call_operand.vmem [shape: f32[3,128], index: 1, kind: input, shape index: {}]
  %s2 = inlined_call_operand.vmem [shape: f32[128,32], index: 2, kind: input, shape index: {}]
  %s3 = inlined_call_operand.vmem [shape: f32[1,32], index: 3, kind: input, shape index: {}]
  %s4 = inlined_call_operand.vmem [shape: f32[128,32], index: 4, kind: output, shape index: {}]
  %s5 = sld [smem:[#allocation0]]
  $region49: #{tpu_custom_call.1} parent=0
    _
  %s7 = ssub.s32 1, %s5
  %s8 = scalar_select 0, %s7, %s5
  loop: start=0, step=1, limit=4
  $region2: #{tpu_custom_call.1} parent=0 // loop_pre_header
    _
  $region3: #{tpu_custom_call.1} parent=0 // loop_header
    %s10 = sphi 0, %s14
    %p11 = scmp.ge.s32.totalorder %s10, 4
    %s20 = sphi 0, %s22
    %s23 = sphi 0, %s20
    %s24 = sphi 0, %s23
    %s40 = sphi 0, %s24
    %s44 = sphi 0, %s44
    %s46 = sphi 0, %s44
    %s47 = sphi 0, %s46
    %s61 = sphi 0, %s47
    %s65 = sphi 0, %s65
    %s67 = sphi 0, %s65
    %s68 = sphi 0, %s67
    %s82 = sphi 0, %s68
    %s86 = sphi 0, %s86
    %s88 = sphi 0, %s86
    %s89 = sphi 0, %s88
    %s103 = sphi 0, %s89
    %s109 = sphi 0, %s111
    %s112 = sphi 0, %s109
    %s113 = sphi 0, %s112
    %s129 = sphi 0, %s113
  $region4: #{tpu_custom_call.1} parent=0 // loop_header_branch
    %13 = sbr.rel (%p11) target = $region8
  $region5: #{tpu_custom_call.1} parent=0 // loop_body
    %s15 = ssub.s32 %s10, 1
    %s16 = ssub.s32 %s10, 2
    %s17 = sadd.s32 %s10, 1
    %s18 = ssub.s32 %s10, %s17
    %p19 = scmp.eq.s32.totalorder %s18, 0
    %s21 = sadd.s32 %s20, 1
    %s22 = scalar_select %p19, %s20, %s21
    %p25 = pneg %p19
    %p26 = scmp.eq.s32.totalorder %s10, 1
    %p27 = por %p25, %p26
    %p28 = scmp.ne.s32.totalorder %s20, %s23
    %p29 = scmp.eq.s32.totalorder %s10, 0
    %p30 = por %p28, %p29
    %p31 = scmp.ne.s32.totalorder %s20, %s23
    %p32 = scmp.eq.s32.totalorder %s15, 1
    %p33 = por %p31, %p32
    %p34 = scmp.ne.s32.totalorder %s23, %s24
    %p35 = scmp.eq.s32.totalorder %s15, 0
    %p36 = por %p34, %p35
    %p37 = scmp.ne.s32.totalorder %s23, %s24
    %p38 = scmp.eq.s32.totalorder %s16, 1
    %p39 = por %p37, %p38
    %p41 = scmp.ne.s32.totalorder %s24, %s40
    %p42 = scmp.eq.s32.totalorder %s16, 0
    %p43 = por %p41, %p42
    %s45 = sadd.s32 %s44, 1
    %p48 = scmp.eq.s32.totalorder %s10, 1
    %p49 = scmp.ne.s32.totalorder %s44, %s46
    %p50 = scmp.eq.s32.totalorder %s10, 0
    %p51 = por %p49, %p50
    %p52 = scmp.ne.s32.totalorder %s44, %s46
    %p53 = scmp.eq.s32.totalorder %s15, 1
    %p54 = por %p52, %p53
    %p55 = scmp.ne.s32.totalorder %s46, %s47
    %p56 = scmp.eq.s32.totalorder %s15, 0
    %p57 = por %p55, %p56
    %p58 = scmp.ne.s32.totalorder %s46, %s47
    %p59 = scmp.eq.s32.totalorder %s16, 1
    %p60 = por %p58, %p59
    %p62 = scmp.ne.s32.totalorder %s47, %s61
    %p63 = scmp.eq.s32.totalorder %s16, 0
    %p64 = por %p62, %p63
    %s66 = sadd.s32 %s65, 1
    %p69 = scmp.eq.s32.totalorder %s10, 1
    %p70 = scmp.ne.s32.totalorder %s65, %s67
    %p71 = scmp.eq.s32.totalorder %s10, 0
    %p72 = por %p70, %p71
    %p73 = scmp.ne.s32.totalorder %s65, %s67
    %p74 = scmp.eq.s32.totalorder %s15, 1
    %p75 = por %p73, %p74
    %p76 = scmp.ne.s32.totalorder %s67, %s68
    %p77 = scmp.eq.s32.totalorder %s15, 0
    %p78 = por %p76, %p77
    %p79 = scmp.ne.s32.totalorder %s67, %s68
    %p80 = scmp.eq.s32.totalorder %s16, 1
    %p81 = por %p79, %p80
    %p83 = scmp.ne.s32.totalorder %s68, %s82
    %p84 = scmp.eq.s32.totalorder %s16, 0
    %p85 = por %p83, %p84
    %s87 = sadd.s32 %s86, 1
    %p90 = scmp.eq.s32.totalorder %s10, 1
    %p91 = scmp.ne.s32.totalorder %s86, %s88
    %p92 = scmp.eq.s32.totalorder %s10, 0
    %p93 = por %p91, %p92
    %p94 = scmp.ne.s32.totalorder %s86, %s88
    %p95 = scmp.eq.s32.totalorder %s15, 1
    %p96 = por %p94, %p95
    %p97 = scmp.ne.s32.totalorder %s88, %s89
    %p98 = scmp.eq.s32.totalorder %s15, 0
    %p99 = por %p97, %p98
    %p100 = scmp.ne.s32.totalorder %s88, %s89
    %p101 = scmp.eq.s32.totalorder %s16, 1
    %p102 = por %p100, %p101
    %p104 = scmp.ne.s32.totalorder %s89, %s103
    %p105 = scmp.eq.s32.totalorder %s16, 0
    %p106 = por %p104, %p105
    %s107 = ssub.s32 %s10, %s17
    %p108 = scmp.eq.s32.totalorder %s107, 0
    %s110 = sadd.s32 %s109, 1
    %s111 = scalar_select %p108, %s109, %s110
    %p114 = pneg %p108
    %p115 = scmp.eq.s32.totalorder %s10, 1
    %p116 = por %p114, %p115
    %p117 = scmp.ne.s32.totalorder %s109, %s112
    %p118 = scmp.eq.s32.totalorder %s10, 0
    %p119 = por %p117, %p118
    %p120 = scmp.ne.s32.totalorder %s109, %s112
    %p121 = scmp.eq.s32.totalorder %s15, 1
    %p122 = por %p120, %p121
    %p123 = scmp.ne.s32.totalorder %s112, %s113
    %p124 = scmp.eq.s32.totalorder %s15, 0
    %p125 = por %p123, %p124
    %p126 = scmp.ne.s32.totalorder %s112, %s113
    %p127 = scmp.eq.s32.totalorder %s16, 1
    %p128 = por %p126, %p127
    %p130 = scmp.ne.s32.totalorder %s113, %s129
    %p131 = scmp.eq.s32.totalorder %s16, 0
    %p132 = por %p130, %p131
    %p133 = scmp.le.s32.totalorder 1, %s10
    %p134 = scmp.lt.s32.totalorder %s10, 3
    %p135 = pnand %p133, %p134
    %p136 = pneg %p135
    // Predicated region
    $region9: #{tpu_custom_call.1} parent=5 // pred_check
      _
    $region10: #{tpu_custom_call.1} parent=5 // pred_check_branch
      %138 = sbr.rel (%p135) target = $region12
    $region11: #{tpu_custom_call.1} parent=5 // pred_region
      %s139 = ssub.s32 %s10, 1
      // Predicated region
      $region13: #{tpu_custom_call.1} parent=11 // pred_check
        %p140 = pneg %p57
      $region14: #{tpu_custom_call.1} parent=11 // pred_check_branch
        %142 = sbr.rel (%p140) target = $region16
      $region15: #{tpu_custom_call.1} parent=11 // pred_region
        _
      $region16: #{tpu_custom_call.1} parent=11 // pred_fallthru
        _
      // Predicated region
      $region17: #{tpu_custom_call.1} parent=11 // pred_check
        %p143 = pneg %p78
      $region18: #{tpu_custom_call.1} parent=11 // pred_check_branch
        %145 = sbr.rel (%p143) target = $region20
      $region19: #{tpu_custom_call.1} parent=11 // pred_region
        _
      $region20: #{tpu_custom_call.1} parent=11 // pred_fallthru
        _
      // Predicated region
      $region21: #{tpu_custom_call.1} parent=11 // pred_check
        %p146 = pneg %p99
      $region22: #{tpu_custom_call.1} parent=11 // pred_check_branch
        %148 = sbr.rel (%p146) target = $region24
      $region23: #{tpu_custom_call.1} parent=11 // pred_region
        _
      $region24: #{tpu_custom_call.1} parent=11 // pred_fallthru
        _
    $region12: #{tpu_custom_call.1} parent=5 // pred_fallthru
      _
    %p149 = scmp.lt.s32.totalorder %s10, 2
    // Predicated region
    $region25: #{tpu_custom_call.1} parent=5 // pred_check
      %p150 = pneg %p149
    $region26: #{tpu_custom_call.1} parent=5 // pred_check_branch
      %152 = sbr.rel (%p150) target = $region28
    $region27: #{tpu_custom_call.1} parent=5 // pred_region
      // Predicated region
      $region29: #{tpu_custom_call.1} parent=27 // pred_check
        %p153 = pneg %p30
      $region30: #{tpu_custom_call.1} parent=27 // pred_check_branch
        %155 = sbr.rel (%p153) target = $region32
      $region31: #{tpu_custom_call.1} parent=27 // pred_region
        %s156 = smul.u32 8, %s10
        %p157 = scmp.lt.s32.totalorder %s156, 15
        %s158 = scalar_select %p157, %s156, 15
        %s159 = smul.addr %s158, 8
        %s160 = scalar_lea.vmem %s0, %s159
        %s161 = smul.u32 8, %s10
      $region32: #{tpu_custom_call.1} parent=27 // pred_fallthru
        _
    $region28: #{tpu_custom_call.1} parent=5 // pred_fallthru
      _
    %p162 = scmp.le.s32.totalorder 1, %s10
    %p163 = scmp.lt.s32.totalorder %s10, 3
    %p164 = pnand %p162, %p163
    %p165 = pneg %p164
    // Predicated region
    $region33: #{tpu_custom_call.1} parent=5 // pred_check
      _
    $region34: #{tpu_custom_call.1} parent=5 // pred_check_branch
      %167 = sbr.rel (%p164) target = $region36
    $region35: #{tpu_custom_call.1} parent=5 // pred_region
      %s168 = ssub.s32 %s10, 1
      %s169 = smul.u32 8, %s15
      %p170 = scmp.lt.s32.totalorder %s169, 15
      %s171 = scalar_select %p170, %s169, 15
      %s172 = smul.addr %s171, 8
      %s173 = scalar_lea.vmem %s0, %s172
      %p174 = pneg %p36
      %p175 = pneg %p33
      %p176 = pneg %p57
      %p177 = pneg %p54
      %p178 = pneg %p78
      %p179 = pneg %p75
      %p180 = pneg %p99
      %p181 = pneg %p96
      %p182 = pneg %p125
      %p183 = pneg %p122
      %s184 = smul.u32 8, %s15
      %p185 = scmp.lt.s32.totalorder %s184, 15
      %s186 = scalar_select %p185, %s184, 15
      %s187 = smul.addr %s186, 8
      %s188 = scalar_lea.vmem %s4, %s187
      %s189 = smul.u32 8, %s15
      %p190 = scmp.lt.s32.totalorder %s189, 15
      %s191 = scalar_select %p190, %s189, 15
      %s192 = smul.addr %s191, 8
      %s193 = scalar_lea.vmem %s0, %s192
      %s194 = smul.u32 8, %s15
      %s195 = smul.u32 8, %s15
      %p196 = scmp.lt.s32.totalorder %s195, 15
      %s197 = scalar_select %p196, %s195, 15
      %s198 = smul.addr %s197, 8
      %s199 = scalar_lea.vmem %s4, %s198
      %s200 = smul.u32 8, %s15
      %v201 = vld [vmem:[%s193] sm:$0xff]
      %v202 = vld [vmem:[%s193 + $0x8] sm:$0xff]
      %v203 = vld [vmem:[%s193 + $0x10] sm:$0xff]
      %v204 = vld [vmem:[%s193 + $0x18] sm:$0xff]
      %v205 = vld [vmem:[%s193 + $0x20] sm:$0xff]
      %v206 = vld [vmem:[%s193 + $0x28] sm:$0xff]
      %v207 = vld [vmem:[%s193 + $0x30] sm:$0xff]
      %v208 = vld [vmem:[%s193 + $0x38] sm:$0xff]
      %v209 = vld [vmem:[%s1] sm:$0x7]
      %vm210 = vcmask 23552
      %v212 = vsel %vm210, %v201, 0
      %v215 = vsel %vm210, %v202, 0
      %v218 = vsel %vm210, %v203, 0
      %v221 = vsel %vm210, %v204, 0
      %v224 = vsel %vm210, %v205, 0
      %v227 = vsel %vm210, %v206, 0
      %v230 = vsel %vm210, %v207, 0
      %v233 = vsel %vm210, %v208, 0
      %vm235 = vcmask 1042432
      %v237 = vsel %vm235, %v209, 0
      %239 = vmatprep.subr.mxu0 0.0
      %240 = vmatpush1.msra.mxu0 0.0
      %241 = vmatprep.subr.mxu0 0.0
      %242 = vmatpush1.msra.mxu0 0.0
      %243 = vmatprep.subr.mxu0 0.0
      %244 = vmatpush1.msra.mxu0 0.0
      %245 = vmatprep.subr.mxu0 0.0
      %246 = vmatpush1.msra.mxu0 0.0
      %247 = vmatprep.subr.mxu0 0.0
      %248 = vmatpush1.msra.mxu0 0.0
      %249 = vmatprep.subr.mxu0 0.0
      %250 = vmatpush1.msra.mxu0 0.0
      %251 = vmatprep.subr.mxu0 0.0
      %252 = vmatpush1.msra.mxu0 0.0
      %253 = vmatprep.subr.mxu0 0.0
      %254 = vmatpush1.msra.mxu0 0.0
      %255 = vmatprep.subr.mxu0 0.0
      %256 = vmatpush1.msra.mxu0 0.0
      %257 = vmatprep.subr.mxu0 0.0
      %258 = vmatpush1.msra.mxu0 0.0
      %259 = vmatprep.subr.mxu0 0.0
      %260 = vmatpush1.msra.mxu0 0.0
      %261 = vmatprep.subr.mxu0 0.0
      %262 = vmatpush1.msra.mxu0 0.0
      %263 = vmatprep.subr.mxu0 0.0
      %264 = vmatpush1.msra.mxu0 0.0
      %265 = vmatprep.subr.mxu0 0.0
      %266 = vmatpush1.msra.mxu0 0.0
      %267 = vmatprep.subr.mxu0 0.0
      %268 = vmatpush1.msra.mxu0 0.0
      %269 = vmatprep.subr.mxu0 0.0
      %v270 = vand.u32 %v237, 4294901760
      %271 = vmatpush1.msra.mxu0 %v270
      %272 = vmatprep.subr.mxu0 0.0
      %273 = vmatpush2.msra.mxu0 0.0
      %274 = vmatprep.subr.mxu0 0.0
      %275 = vmatpush2.msra.mxu0 0.0
      %276 = vmatprep.subr.mxu0 0.0
      %277 = vmatpush2.msra.mxu0 0.0
      %278 = vmatprep.subr.mxu0 0.0
      %279 = vmatpush2.msra.mxu0 0.0
      %280 = vmatprep.subr.mxu0 0.0
      %281 = vmatpush2.msra.mxu0 0.0
      %282 = vmatprep.subr.mxu0 0.0
      %283 = vmatpush2.msra.mxu0 0.0
      %284 = vmatprep.subr.mxu0 0.0
      %285 = vmatpush2.msra.mxu0 0.0
      %286 = vmatprep.subr.mxu0 0.0
      %287 = vmatpush2.msra.mxu0 0.0
      %288 = vmatprep.subr.mxu0 0.0
      %289 = vmatpush2.msra.mxu0 0.0
      %290 = vmatprep.subr.mxu0 0.0
      %291 = vmatpush2.msra.mxu0 0.0
      %292 = vmatprep.subr.mxu0 0.0
      %293 = vmatpush2.msra.mxu0 0.0
      %294 = vmatprep.subr.mxu0 0.0
      %295 = vmatpush2.msra.mxu0 0.0
      %296 = vmatprep.subr.mxu0 0.0
      %297 = vmatpush2.msra.mxu0 0.0
      %298 = vmatprep.subr.mxu0 0.0
      %299 = vmatpush2.msra.mxu0 0.0
      %300 = vmatprep.subr.mxu0 0.0
      %301 = vmatpush2.msra.mxu0 0.0
      %302 = vmatprep.subr.mxu0 0.0
      %303 = vmatpush2.msra.mxu0 0.0
      %304 = vmatprep.mubr.f32.mxu0 0.0
      %v305 = vand.u32 %v212, 4294901760
      %v306 = vsub.f32 %v212, %v305
      %v307 = vand.u32 %v306, 4294901760
      %v308 = vsub.f32 %v306, %v307
      %v309 = vand.u32 %v308, 4294901760
      %310 = vmatmul.mubr.f32.gmra.mxu0 %v309
      %v311 = vpop.f32.mrf.mxu0
      %v312 = vadd.f32 0.0, %v311
      %v313 = vpop.f32.mrf.mxu0
      %314 = vmatprep.mubr.f32.mxu0 0.0
      %v315 = vand.u32 %v215, 4294901760
      %v316 = vsub.f32 %v215, %v315
      %v317 = vand.u32 %v316, 4294901760
      %v318 = vsub.f32 %v316, %v317
      %v319 = vand.u32 %v318, 4294901760
      %320 = vmatmul.mubr.f32.gmra.mxu0 %v319
      %v321 = vpop.f32.mrf.mxu0
      %v322 = vadd.f32 0.0, %v321
      %v323 = vpop.f32.mrf.mxu0
      %324 = vmatprep.mubr.f32.mxu0 0.0
      %v325 = vand.u32 %v218, 4294901760
      %v326 = vsub.f32 %v218, %v325
      %v327 = vand.u32 %v326, 4294901760
      %v328 = vsub.f32 %v326, %v327
      %v329 = vand.u32 %v328, 4294901760
      %330 = vmatmul.mubr.f32.gmra.mxu0 %v329
      %v331 = vpop.f32.mrf.mxu0
      %v332 = vadd.f32 0.0, %v331
      %v333 = vpop.f32.mrf.mxu0
      %334 = vmatprep.mubr.f32.mxu0 0.0
      %v335 = vand.u32 %v221, 4294901760
      %v336 = vsub.f32 %v221, %v335
      %v337 = vand.u32 %v336, 4294901760
      %v338 = vsub.f32 %v336, %v337
      %v339 = vand.u32 %v338, 4294901760
      %340 = vmatmul.mubr.f32.gmra.mxu0 %v339
      %v341 = vpop.f32.mrf.mxu0
      %v342 = vadd.f32 0.0, %v341
      %v343 = vpop.f32.mrf.mxu0
      %344 = vmatprep.mubr.f32.mxu0 0.0
      %v345 = vand.u32 %v224, 4294901760
      %v346 = vsub.f32 %v224, %v345
      %v347 = vand.u32 %v346, 4294901760
      %v348 = vsub.f32 %v346, %v347
      %v349 = vand.u32 %v348, 4294901760
      %350 = vmatmul.mubr.f32.gmra.mxu0 %v349
      %v351 = vpop.f32.mrf.mxu0
      %v352 = vadd.f32 0.0, %v351
      %v353 = vpop.f32.mrf.mxu0
      %354 = vmatprep.mubr.f32.mxu0 0.0
      %v355 = vand.u32 %v227, 4294901760
      %v356 = vsub.f32 %v227, %v355
      %v357 = vand.u32 %v356, 4294901760
      %v358 = vsub.f32 %v356, %v357
      %v359 = vand.u32 %v358, 4294901760
      %360 = vmatmul.mubr.f32.gmra.mxu0 %v359
      %v361 = vpop.f32.mrf.mxu0
      %v362 = vadd.f32 0.0, %v361
      %v363 = vpop.f32.mrf.mxu0
      %364 = vmatprep.mubr.f32.mxu0 0.0
      %v365 = vand.u32 %v230, 4294901760
      %v366 = vsub.f32 %v230, %v365
      %v367 = vand.u32 %v366, 4294901760
      %v368 = vsub.f32 %v366, %v367
      %v369 = vand.u32 %v368, 4294901760
      %370 = vmatmul.mubr.f32.gmra.mxu0 %v369
      %v371 = vpop.f32.mrf.mxu0
      %v372 = vadd.f32 0.0, %v371
      %v373 = vpop.f32.mrf.mxu0
      %374 = vmatprep.mubr.f32.mxu0 0.0
      %v375 = vand.u32 %v233, 4294901760
      %v376 = vsub.f32 %v233, %v375
      %v377 = vand.u32 %v376, 4294901760
      %v378 = vsub.f32 %v376, %v377
      %v379 = vand.u32 %v378, 4294901760
      %380 = vmatmul.mubr.f32.gmra.mxu0 %v379
      %v381 = vpop.f32.mrf.mxu0
      %v382 = vadd.f32 0.0, %v381
      %v383 = vpop.f32.mrf.mxu0
      %384 = vdwg.mxu0
      %385 = vmatprep.subr.mxu0 0.0
      %386 = vmatpush1.msra.mxu0 0.0
      %387 = vmatprep.subr.mxu0 0.0
      %388 = vmatpush1.msra.mxu0 0.0
      %389 = vmatprep.subr.mxu0 0.0
      %390 = vmatpush1.msra.mxu0 0.0
      %391 = vmatprep.subr.mxu0 0.0
      %392 = vmatpush1.msra.mxu0 0.0
      %393 = vmatprep.subr.mxu0 0.0
      %394 = vmatpush1.msra.mxu0 0.0
      %395 = vmatprep.subr.mxu0 0.0
      %396 = vmatpush1.msra.mxu0 0.0
      %397 = vmatprep.subr.mxu0 0.0
      %398 = vmatpush1.msra.mxu0 0.0
      %399 = vmatprep.subr.mxu0 0.0
      %400 = vmatpush1.msra.mxu0 0.0
      %401 = vmatprep.subr.mxu0 0.0
      %402 = vmatpush1.msra.mxu0 0.0
      %403 = vmatprep.subr.mxu0 0.0
      %404 = vmatpush1.msra.mxu0 0.0
      %405 = vmatprep.subr.mxu0 0.0
      %406 = vmatpush1.msra.mxu0 0.0
      %407 = vmatprep.subr.mxu0 0.0
      %408 = vmatpush1.msra.mxu0 0.0
      %409 = vmatprep.subr.mxu0 0.0
      %410 = vmatpush1.msra.mxu0 0.0
      %411 = vmatprep.subr.mxu0 0.0
      %412 = vmatpush1.msra.mxu0 0.0
      %413 = vmatprep.subr.mxu0 0.0
      %414 = vmatpush1.msra.mxu0 0.0
      %415 = vmatprep.subr.mxu0 0.0
      %v416 = vand.u32 %v237, 4294901760
      %v417 = vsub.f32 %v237, %v416
      %v418 = vand.u32 %v417, 4294901760
      %v419 = vsub.f32 %v417, %v418
      %v420 = vand.u32 %v419, 4294901760
      %421 = vmatpush1.msra.mxu0 %v420
      %422 = vmatprep.subr.mxu0 0.0
      %423 = vmatpush2.msra.mxu0 0.0
      %424 = vmatprep.subr.mxu0 0.0
      %425 = vmatpush2.msra.mxu0 0.0
      %426 = vmatprep.subr.mxu0 0.0
      %427 = vmatpush2.msra.mxu0 0.0
      %428 = vmatprep.subr.mxu0 0.0
      %429 = vmatpush2.msra.mxu0 0.0
      %430 = vmatprep.subr.mxu0 0.0
      %431 = vmatpush2.msra.mxu0 0.0
      %432 = vmatprep.subr.mxu0 0.0
      %433 = vmatpush2.msra.mxu0 0.0
      %434 = vmatprep.subr.mxu0 0.0
      %435 = vmatpush2.msra.mxu0 0.0
      %436 = vmatprep.subr.mxu0 0.0
      %437 = vmatpush2.msra.mxu0 0.0
      %438 = vmatprep.subr.mxu0 0.0
      %439 = vmatpush2.msra.mxu0 0.0
      %440 = vmatprep.subr.mxu0 0.0
      %441 = vmatpush2.msra.mxu0 0.0
      %442 = vmatprep.subr.mxu0 0.0
      %443 = vmatpush2.msra.mxu0 0.0
      %444 = vmatprep.subr.mxu0 0.0
      %445 = vmatpush2.msra.mxu0 0.0
      %446 = vmatprep.subr.mxu0 0.0
      %447 = vmatpush2.msra.mxu0 0.0
      %448 = vmatprep.subr.mxu0 0.0
      %449 = vmatpush2.msra.mxu0 0.0
      %450 = vmatprep.subr.mxu0 0.0
      %451 = vmatpush2.msra.mxu0 0.0
      %452 = vmatprep.subr.mxu0 0.0
      %453 = vmatpush2.msra.mxu0 0.0
      %454 = vmatprep.mubr.f32.mxu0 0.0
      %v455 = vand.u32 %v212, 4294901760
      %456 = vmatmul.mubr.f32.gmra.mxu0 %v455
      %v457 = vpop.f32.mrf.mxu0
      %v458 = vadd.f32 %v312, %v457
      %v459 = vpop.f32.mrf.mxu0
      %460 = vmatprep.mubr.f32.mxu0 0.0
      %v461 = vand.u32 %v215, 4294901760
      %462 = vmatmul.mubr.f32.gmra.mxu0 %v461
      %v463 = vpop.f32.mrf.mxu0
      %v464 = vadd.f32 %v322, %v463
      %v465 = vpop.f32.mrf.mxu0
      %466 = vmatprep.mubr.f32.mxu0 0.0
      %v467 = vand.u32 %v218, 4294901760
      %468 = vmatmul.mubr.f32.gmra.mxu0 %v467
      %v469 = vpop.f32.mrf.mxu0
      %v470 = vadd.f32 %v332, %v469
      %v471 = vpop.f32.mrf.mxu0
      %472 = vmatprep.mubr.f32.mxu0 0.0
      %v473 = vand.u32 %v221, 4294901760
      %474 = vmatmul.mubr.f32.gmra.mxu0 %v473
      %v475 = vpop.f32.mrf.mxu0
      %v476 = vadd.f32 %v342, %v475
      %v477 = vpop.f32.mrf.mxu0
      %478 = vmatprep.mubr.f32.mxu0 0.0
      %v479 = vand.u32 %v224, 4294901760
      %480 = vmatmul.mubr.f32.gmra.mxu0 %v479
      %v481 = vpop.f32.mrf.mxu0
      %v482 = vadd.f32 %v352, %v481
      %v483 = vpop.f32.mrf.mxu0
      %484 = vmatprep.mubr.f32.mxu0 0.0
      %v485 = vand.u32 %v227, 4294901760
      %486 = vmatmul.mubr.f32.gmra.mxu0 %v485
      %v487 = vpop.f32.mrf.mxu0
      %v488 = vadd.f32 %v362, %v487
      %v489 = vpop.f32.mrf.mxu0
      %490 = vmatprep.mubr.f32.mxu0 0.0
      %v491 = vand.u32 %v230, 4294901760
      %492 = vmatmul.mubr.f32.gmra.mxu0 %v491
      %v493 = vpop.f32.mrf.mxu0
      %v494 = vadd.f32 %v372, %v493
      %v495 = vpop.f32.mrf.mxu0
      %496 = vmatprep.mubr.f32.mxu0 0.0
      %v497 = vand.u32 %v233, 4294901760
      %498 = vmatmul.mubr.f32.gmra.mxu0 %v497
      %v499 = vpop.f32.mrf.mxu0
      %v500 = vadd.f32 %v382, %v499
      %v501 = vpop.f32.mrf.mxu0
      %502 = vdwg.mxu0
      %503 = vmatprep.subr.mxu0 0.0
      %504 = vmatpush1.msra.mxu0 0.0
      %505 = vmatprep.subr.mxu0 0.0
      %506 = vmatpush1.msra.mxu0 0.0
      %507 = vmatprep.subr.mxu0 0.0
      %508 = vmatpush1.msra.mxu0 0.0
      %509 = vmatprep.subr.mxu0 0.0
      %510 = vmatpush1.msra.mxu0 0.0
      %511 = vmatprep.subr.mxu0 0.0
      %512 = vmatpush1.msra.mxu0 0.0
      %513 = vmatprep.subr.mxu0 0.0
      %514 = vmatpush1.msra.mxu0 0.0
      %515 = vmatprep.subr.mxu0 0.0
      %516 = vmatpush1.msra.mxu0 0.0
      %517 = vmatprep.subr.mxu0 0.0
      %518 = vmatpush1.msra.mxu0 0.0
      %519 = vmatprep.subr.mxu0 0.0
      %520 = vmatpush1.msra.mxu0 0.0
      %521 = vmatprep.subr.mxu0 0.0
      %522 = vmatpush1.msra.mxu0 0.0
      %523 = vmatprep.subr.mxu0 0.0
      %524 = vmatpush1.msra.mxu0 0.0
      %525 = vmatprep.subr.mxu0 0.0
      %526 = vmatpush1.msra.mxu0 0.0
      %527 = vmatprep.subr.mxu0 0.0
      %528 = vmatpush1.msra.mxu0 0.0
      %529 = vmatprep.subr.mxu0 0.0
      %530 = vmatpush1.msra.mxu0 0.0
      %531 = vmatprep.subr.mxu0 0.0
      %532 = vmatpush1.msra.mxu0 0.0
      %533 = vmatprep.subr.mxu0 0.0
      %v534 = vand.u32 %v237, 4294901760
      %v535 = vsub.f32 %v237, %v534
      %536 = vmatpush1.msra.mxu0 %v535
      %537 = vmatprep.subr.mxu0 0.0
      %538 = vmatpush2.msra.mxu0 0.0
      %539 = vmatprep.subr.mxu0 0.0
      %540 = vmatpush2.msra.mxu0 0.0
      %541 = vmatprep.subr.mxu0 0.0
      %542 = vmatpush2.msra.mxu0 0.0
      %543 = vmatprep.subr.mxu0 0.0
      %544 = vmatpush2.msra.mxu0 0.0
      %545 = vmatprep.subr.mxu0 0.0
      %546 = vmatpush2.msra.mxu0 0.0
      %547 = vmatprep.subr.mxu0 0.0
      %548 = vmatpush2.msra.mxu0 0.0
      %549 = vmatprep.subr.mxu0 0.0
      %550 = vmatpush2.msra.mxu0 0.0
      %551 = vmatprep.subr.mxu0 0.0
      %552 = vmatpush2.msra.mxu0 0.0
      %553 = vmatprep.subr.mxu0 0.0
      %554 = vmatpush2.msra.mxu0 0.0
      %555 = vmatprep.subr.mxu0 0.0
      %556 = vmatpush2.msra.mxu0 0.0
      %557 = vmatprep.subr.mxu0 0.0
      %558 = vmatpush2.msra.mxu0 0.0
      %559 = vmatprep.subr.mxu0 0.0
      %560 = vmatpush2.msra.mxu0 0.0
      %561 = vmatprep.subr.mxu0 0.0
      %562 = vmatpush2.msra.mxu0 0.0
      %563 = vmatprep.subr.mxu0 0.0
      %564 = vmatpush2.msra.mxu0 0.0
      %565 = vmatprep.subr.mxu0 0.0
      %566 = vmatpush2.msra.mxu0 0.0
      %567 = vmatprep.subr.mxu0 0.0
      %568 = vmatpush2.msra.mxu0 0.0
      %569 = vmatprep.mubr.f32.mxu0 0.0
      %v570 = vand.u32 %v212, 4294901760
      %v571 = vsub.f32 %v212, %v570
      %572 = vmatmul.mubr.f32.gmra.mxu0 %v571
      %v573 = vpop.f32.mrf.mxu0
      %v574 = vadd.f32 %v458, %v573
      %v575 = vpop.f32.mrf.mxu0
      %576 = vmatprep.mubr.f32.mxu0 0.0
      %v577 = vand.u32 %v215, 4294901760
      %v578 = vsub.f32 %v215, %v577
      %579 = vmatmul.mubr.f32.gmra.mxu0 %v578
      %v580 = vpop.f32.mrf.mxu0
      %v581 = vadd.f32 %v464, %v580
      %v582 = vpop.f32.mrf.mxu0
      %583 = vmatprep.mubr.f32.mxu0 0.0
      %v584 = vand.u32 %v218, 4294901760
      %v585 = vsub.f32 %v218, %v584
      %586 = vmatmul.mubr.f32.gmra.mxu0 %v585
      %v587 = vpop.f32.mrf.mxu0
      %v588 = vadd.f32 %v470, %v587
      %v589 = vpop.f32.mrf.mxu0
      %590 = vmatprep.mubr.f32.mxu0 0.0
      %v591 = vand.u32 %v221, 4294901760
      %v592 = vsub.f32 %v221, %v591
      %593 = vmatmul.mubr.f32.gmra.mxu0 %v592
      %v594 = vpop.f32.mrf.mxu0
      %v595 = vadd.f32 %v476, %v594
      %v596 = vpop.f32.mrf.mxu0
      %597 = vmatprep.mubr.f32.mxu0 0.0
      %v598 = vand.u32 %v224, 4294901760
      %v599 = vsub.f32 %v224, %v598
      %600 = vmatmul.mubr.f32.gmra.mxu0 %v599
      %v601 = vpop.f32.mrf.mxu0
      %v602 = vadd.f32 %v482, %v601
      %v603 = vpop.f32.mrf.mxu0
      %604 = vmatprep.mubr.f32.mxu0 0.0
      %v605 = vand.u32 %v227, 4294901760
      %v606 = vsub.f32 %v227, %v605
      %607 = vmatmul.mubr.f32.gmra.mxu0 %v606
      %v608 = vpop.f32.mrf.mxu0
      %v609 = vadd.f32 %v488, %v608
      %v610 = vpop.f32.mrf.mxu0
      %611 = vmatprep.mubr.f32.mxu0 0.0
      %v612 = vand.u32 %v230, 4294901760
      %v613 = vsub.f32 %v230, %v612
      %614 = vmatmul.mubr.f32.gmra.mxu0 %v613
      %v615 = vpop.f32.mrf.mxu0
      %v616 = vadd.f32 %v494, %v615
      %v617 = vpop.f32.mrf.mxu0
      %618 = vmatprep.mubr.f32.mxu0 0.0
      %v619 = vand.u32 %v233, 4294901760
      %v620 = vsub.f32 %v233, %v619
      %621 = vmatmul.mubr.f32.gmra.mxu0 %v620
      %v622 = vpop.f32.mrf.mxu0
      %v623 = vadd.f32 %v500, %v622
      %v624 = vpop.f32.mrf.mxu0
      %625 = vdwg.mxu0
      %626 = vmatprep.subr.mxu0 0.0
      %627 = vmatpush1.msra.mxu0 0.0
      %628 = vmatprep.subr.mxu0 0.0
      %629 = vmatpush1.msra.mxu0 0.0
      %630 = vmatprep.subr.mxu0 0.0
      %631 = vmatpush1.msra.mxu0 0.0
      %632 = vmatprep.subr.mxu0 0.0
      %633 = vmatpush1.msra.mxu0 0.0
      %634 = vmatprep.subr.mxu0 0.0
      %635 = vmatpush1.msra.mxu0 0.0
      %636 = vmatprep.subr.mxu0 0.0
      %637 = vmatpush1.msra.mxu0 0.0
      %638 = vmatprep.subr.mxu0 0.0
      %639 = vmatpush1.msra.mxu0 0.0
      %640 = vmatprep.subr.mxu0 0.0
      %641 = vmatpush1.msra.mxu0 0.0
      %642 = vmatprep.subr.mxu0 0.0
      %643 = vmatpush1.msra.mxu0 0.0
      %644 = vmatprep.subr.mxu0 0.0
      %645 = vmatpush1.msra.mxu0 0.0
      %646 = vmatprep.subr.mxu0 0.0
      %647 = vmatpush1.msra.mxu0 0.0
      %648 = vmatprep.subr.mxu0 0.0
      %649 = vmatpush1.msra.mxu0 0.0
      %650 = vmatprep.subr.mxu0 0.0
      %651 = vmatpush1.msra.mxu0 0.0
      %652 = vmatprep.subr.mxu0 0.0
      %653 = vmatpush1.msra.mxu0 0.0
      %654 = vmatprep.subr.mxu0 0.0
      %655 = vmatpush1.msra.mxu0 0.0
      %656 = vmatprep.subr.mxu0 0.0
      %v657 = vand.u32 %v237, 4294901760
      %658 = vmatpush1.msra.mxu0 %v657
      %659 = vmatprep.subr.mxu0 0.0
      %660 = vmatpush2.msra.mxu0 0.0
      %661 = vmatprep.subr.mxu0 0.0
      %662 = vmatpush2.msra.mxu0 0.0
      %663 = vmatprep.subr.mxu0 0.0
      %664 = vmatpush2.msra.mxu0 0.0
      %665 = vmatprep.subr.mxu0 0.0
      %666 = vmatpush2.msra.mxu0 0.0
      %667 = vmatprep.subr.mxu0 0.0
      %668 = vmatpush2.msra.mxu0 0.0
      %669 = vmatprep.subr.mxu0 0.0
      %670 = vmatpush2.msra.mxu0 0.0
      %671 = vmatprep.subr.mxu0 0.0
      %672 = vmatpush2.msra.mxu0 0.0
      %673 = vmatprep.subr.mxu0 0.0
      %674 = vmatpush2.msra.mxu0 0.0
      %675 = vmatprep.subr.mxu0 0.0
      %676 = vmatpush2.msra.mxu0 0.0
      %677 = vmatprep.subr.mxu0 0.0
      %678 = vmatpush2.msra.mxu0 0.0
      %679 = vmatprep.subr.mxu0 0.0
      %680 = vmatpush2.msra.mxu0 0.0
      %681 = vmatprep.subr.mxu0 0.0
      %682 = vmatpush2.msra.mxu0 0.0
      %683 = vmatprep.subr.mxu0 0.0
      %684 = vmatpush2.msra.mxu0 0.0
      %685 = vmatprep.subr.mxu0 0.0
      %686 = vmatpush2.msra.mxu0 0.0
      %687 = vmatprep.subr.mxu0 0.0
      %688 = vmatpush2.msra.mxu0 0.0
      %689 = vmatprep.subr.mxu0 0.0
      %690 = vmatpush2.msra.mxu0 0.0
      %691 = vmatprep.mubr.f32.mxu0 0.0
      %v692 = vand.u32 %v212, 4294901760
      %v693 = vsub.f32 %v212, %v692
      %v694 = vand.u32 %v693, 4294901760
      %695 = vmatmul.mubr.f32.gmra.mxu0 %v694
      %v696 = vpop.f32.mrf.mxu0
      %v697 = vadd.f32 %v574, %v696
      %v698 = vpop.f32.mrf.mxu0
      %699 = vmatprep.mubr.f32.mxu0 0.0
      %v700 = vand.u32 %v215, 4294901760
      %v701 = vsub.f32 %v215, %v700
      %v702 = vand.u32 %v701, 4294901760
      %703 = vmatmul.mubr.f32.gmra.mxu0 %v702
      %v704 = vpop.f32.mrf.mxu0
      %v705 = vadd.f32 %v581, %v704
      %v706 = vpop.f32.mrf.mxu0
      %707 = vmatprep.mubr.f32.mxu0 0.0
      %v708 = vand.u32 %v218, 4294901760
      %v709 = vsub.f32 %v218, %v708
      %v710 = vand.u32 %v709, 4294901760
      %711 = vmatmul.mubr.f32.gmra.mxu0 %v710
      %v712 = vpop.f32.mrf.mxu0
      %v713 = vadd.f32 %v588, %v712
      %v714 = vpop.f32.mrf.mxu0
      %715 = vmatprep.mubr.f32.mxu0 0.0
      %v716 = vand.u32 %v221, 4294901760
      %v717 = vsub.f32 %v221, %v716
      %v718 = vand.u32 %v717, 4294901760
      %719 = vmatmul.mubr.f32.gmra.mxu0 %v718
      %v720 = vpop.f32.mrf.mxu0
      %v721 = vadd.f32 %v595, %v720
      %v722 = vpop.f32.mrf.mxu0
      %723 = vmatprep.mubr.f32.mxu0 0.0
      %v724 = vand.u32 %v224, 4294901760
      %v725 = vsub.f32 %v224, %v724
      %v726 = vand.u32 %v725, 4294901760
      %727 = vmatmul.mubr.f32.gmra.mxu0 %v726
      %v728 = vpop.f32.mrf.mxu0
      %v729 = vadd.f32 %v602, %v728
      %v730 = vpop.f32.mrf.mxu0
      %731 = vmatprep.mubr.f32.mxu0 0.0
      %v732 = vand.u32 %v227, 4294901760
      %v733 = vsub.f32 %v227, %v732
      %v734 = vand.u32 %v733, 4294901760
      %735 = vmatmul.mubr.f32.gmra.mxu0 %v734
      %v736 = vpop.f32.mrf.mxu0
      %v737 = vadd.f32 %v609, %v736
      %v738 = vpop.f32.mrf.mxu0
      %739 = vmatprep.mubr.f32.mxu0 0.0
      %v740 = vand.u32 %v230, 4294901760
      %v741 = vsub.f32 %v230, %v740
      %v742 = vand.u32 %v741, 4294901760
      %743 = vmatmul.mubr.f32.gmra.mxu0 %v742
      %v744 = vpop.f32.mrf.mxu0
      %v745 = vadd.f32 %v616, %v744
      %v746 = vpop.f32.mrf.mxu0
      %747 = vmatprep.mubr.f32.mxu0 0.0
      %v748 = vand.u32 %v233, 4294901760
      %v749 = vsub.f32 %v233, %v748
      %v750 = vand.u32 %v749, 4294901760
      %751 = vmatmul.mubr.f32.gmra.mxu0 %v750
      %v752 = vpop.f32.mrf.mxu0
      %v753 = vadd.f32 %v623, %v752
      %v754 = vpop.f32.mrf.mxu0
      %755 = vdwg.mxu0
      %756 = vmatprep.subr.mxu0 0.0
      %757 = vmatpush1.msra.mxu0 0.0
      %758 = vmatprep.subr.mxu0 0.0
      %759 = vmatpush1.msra.mxu0 0.0
      %760 = vmatprep.subr.mxu0 0.0
      %761 = vmatpush1.msra.mxu0 0.0
      %762 = vmatprep.subr.mxu0 0.0
      %763 = vmatpush1.msra.mxu0 0.0
      %764 = vmatprep.subr.mxu0 0.0
      %765 = vmatpush1.msra.mxu0 0.0
      %766 = vmatprep.subr.mxu0 0.0
      %767 = vmatpush1.msra.mxu0 0.0
      %768 = vmatprep.subr.mxu0 0.0
      %769 = vmatpush1.msra.mxu0 0.0
      %770 = vmatprep.subr.mxu0 0.0
      %771 = vmatpush1.msra.mxu0 0.0
      %772 = vmatprep.subr.mxu0 0.0
      %773 = vmatpush1.msra.mxu0 0.0
      %774 = vmatprep.subr.mxu0 0.0
      %775 = vmatpush1.msra.mxu0 0.0
      %776 = vmatprep.subr.mxu0 0.0
      %777 = vmatpush1.msra.mxu0 0.0
      %778 = vmatprep.subr.mxu0 0.0
      %779 = vmatpush1.msra.mxu0 0.0
      %780 = vmatprep.subr.mxu0 0.0
      %781 = vmatpush1.msra.mxu0 0.0
      %782 = vmatprep.subr.mxu0 0.0
      %783 = vmatpush1.msra.mxu0 0.0
      %784 = vmatprep.subr.mxu0 0.0
      %785 = vmatpush1.msra.mxu0 0.0
      %786 = vmatprep.subr.mxu0 0.0
      %v787 = vand.u32 %v237, 4294901760
      %v788 = vsub.f32 %v237, %v787
      %v789 = vand.u32 %v788, 4294901760
      %790 = vmatpush1.msra.mxu0 %v789
      %791 = vmatprep.subr.mxu0 0.0
      %792 = vmatpush2.msra.mxu0 0.0
      %793 = vmatprep.subr.mxu0 0.0
      %794 = vmatpush2.msra.mxu0 0.0
      %795 = vmatprep.subr.mxu0 0.0
      %796 = vmatpush2.msra.mxu0 0.0
      %797 = vmatprep.subr.mxu0 0.0
      %798 = vmatpush2.msra.mxu0 0.0
      %799 = vmatprep.subr.mxu0 0.0
      %800 = vmatpush2.msra.mxu0 0.0
      %801 = vmatprep.subr.mxu0 0.0
      %802 = vmatpush2.msra.mxu0 0.0
      %803 = vmatprep.subr.mxu0 0.0
      %804 = vmatpush2.msra.mxu0 0.0
      %805 = vmatprep.subr.mxu0 0.0
      %806 = vmatpush2.msra.mxu0 0.0
      %807 = vmatprep.subr.mxu0 0.0
      %808 = vmatpush2.msra.mxu0 0.0
      %809 = vmatprep.subr.mxu0 0.0
      %810 = vmatpush2.msra.mxu0 0.0
      %811 = vmatprep.subr.mxu0 0.0
      %812 = vmatpush2.msra.mxu0 0.0
      %813 = vmatprep.subr.mxu0 0.0
      %814 = vmatpush2.msra.mxu0 0.0
      %815 = vmatprep.subr.mxu0 0.0
      %816 = vmatpush2.msra.mxu0 0.0
      %817 = vmatprep.subr.mxu0 0.0
      %818 = vmatpush2.msra.mxu0 0.0
      %819 = vmatprep.subr.mxu0 0.0
      %820 = vmatpush2.msra.mxu0 0.0
      %821 = vmatprep.subr.mxu0 0.0
      %822 = vmatpush2.msra.mxu0 0.0
      %823 = vmatprep.mubr.f32.mxu0 0.0
      %v824 = vand.u32 %v212, 4294901760
      %825 = vmatmul.mubr.f32.gmra.mxu0 %v824
      %v826 = vpop.f32.mrf.mxu0
      %v827 = vadd.f32 %v697, %v826
      %v828 = vpop.f32.mrf.mxu0
      %829 = vmatprep.mubr.f32.mxu0 0.0
      %v830 = vand.u32 %v215, 4294901760
      %831 = vmatmul.mubr.f32.gmra.mxu0 %v830
      %v832 = vpop.f32.mrf.mxu0
      %v833 = vadd.f32 %v705, %v832
      %v834 = vpop.f32.mrf.mxu0
      %835 = vmatprep.mubr.f32.mxu0 0.0
      %v836 = vand.u32 %v218, 4294901760
      %837 = vmatmul.mubr.f32.gmra.mxu0 %v836
      %v838 = vpop.f32.mrf.mxu0
      %v839 = vadd.f32 %v713, %v838
      %v840 = vpop.f32.mrf.mxu0
      %841 = vmatprep.mubr.f32.mxu0 0.0
      %v842 = vand.u32 %v221, 4294901760
      %843 = vmatmul.mubr.f32.gmra.mxu0 %v842
      %v844 = vpop.f32.mrf.mxu0
      %v845 = vadd.f32 %v721, %v844
      %v846 = vpop.f32.mrf.mxu0
      %847 = vmatprep.mubr.f32.mxu0 0.0
      %v848 = vand.u32 %v224, 4294901760
      %849 = vmatmul.mubr.f32.gmra.mxu0 %v848
      %v850 = vpop.f32.mrf.mxu0
      %v851 = vadd.f32 %v729, %v850
      %v852 = vpop.f32.mrf.mxu0
      %853 = vmatprep.mubr.f32.mxu0 0.0
      %v854 = vand.u32 %v227, 4294901760
      %855 = vmatmul.mubr.f32.gmra.mxu0 %v854
      %v856 = vpop.f32.mrf.mxu0
      %v857 = vadd.f32 %v737, %v856
      %v858 = vpop.f32.mrf.mxu0
      %859 = vmatprep.mubr.f32.mxu0 0.0
      %v860 = vand.u32 %v230, 4294901760
      %861 = vmatmul.mubr.f32.gmra.mxu0 %v860
      %v862 = vpop.f32.mrf.mxu0
      %v863 = vadd.f32 %v745, %v862
      %v864 = vpop.f32.mrf.mxu0
      %865 = vmatprep.mubr.f32.mxu0 0.0
      %v866 = vand.u32 %v233, 4294901760
      %867 = vmatmul.mubr.f32.gmra.mxu0 %v866
      %v868 = vpop.f32.mrf.mxu0
      %v869 = vadd.f32 %v753, %v868
      %v870 = vpop.f32.mrf.mxu0
      %871 = vdwg.mxu0
      %872 = vmatprep.subr.mxu0 0.0
      %873 = vmatpush1.msra.mxu0 0.0
      %874 = vmatprep.subr.mxu0 0.0
      %875 = vmatpush1.msra.mxu0 0.0
      %876 = vmatprep.subr.mxu0 0.0
      %877 = vmatpush1.msra.mxu0 0.0
      %878 = vmatprep.subr.mxu0 0.0
      %879 = vmatpush1.msra.mxu0 0.0
      %880 = vmatprep.subr.mxu0 0.0
      %881 = vmatpush1.msra.mxu0 0.0
      %882 = vmatprep.subr.mxu0 0.0
      %883 = vmatpush1.msra.mxu0 0.0
      %884 = vmatprep.subr.mxu0 0.0
      %885 = vmatpush1.msra.mxu0 0.0
      %886 = vmatprep.subr.mxu0 0.0
      %887 = vmatpush1.msra.mxu0 0.0
      %888 = vmatprep.subr.mxu0 0.0
      %889 = vmatpush1.msra.mxu0 0.0
      %890 = vmatprep.subr.mxu0 0.0
      %891 = vmatpush1.msra.mxu0 0.0
      %892 = vmatprep.subr.mxu0 0.0
      %893 = vmatpush1.msra.mxu0 0.0
      %894 = vmatprep.subr.mxu0 0.0
      %895 = vmatpush1.msra.mxu0 0.0
      %896 = vmatprep.subr.mxu0 0.0
      %897 = vmatpush1.msra.mxu0 0.0
      %898 = vmatprep.subr.mxu0 0.0
      %899 = vmatpush1.msra.mxu0 0.0
      %900 = vmatprep.subr.mxu0 0.0
      %901 = vmatpush1.msra.mxu0 0.0
      %902 = vmatprep.subr.mxu0 0.0
      %v903 = vand.u32 %v237, 4294901760
      %904 = vmatpush1.msra.mxu0 %v903
      %905 = vmatprep.subr.mxu0 0.0
      %906 = vmatpush2.msra.mxu0 0.0
      %907 = vmatprep.subr.mxu0 0.0
      %908 = vmatpush2.msra.mxu0 0.0
      %909 = vmatprep.subr.mxu0 0.0
      %910 = vmatpush2.msra.mxu0 0.0
      %911 = vmatprep.subr.mxu0 0.0
      %912 = vmatpush2.msra.mxu0 0.0
      %913 = vmatprep.subr.mxu0 0.0
      %914 = vmatpush2.msra.mxu0 0.0
      %915 = vmatprep.subr.mxu0 0.0
      %916 = vmatpush2.msra.mxu0 0.0
      %917 = vmatprep.subr.mxu0 0.0
      %918 = vmatpush2.msra.mxu0 0.0
      %919 = vmatprep.subr.mxu0 0.0
      %920 = vmatpush2.msra.mxu0 0.0
      %921 = vmatprep.subr.mxu0 0.0
      %922 = vmatpush2.msra.mxu0 0.0
      %923 = vmatprep.subr.mxu0 0.0
      %924 = vmatpush2.msra.mxu0 0.0
      %925 = vmatprep.subr.mxu0 0.0
      %926 = vmatpush2.msra.mxu0 0.0
      %927 = vmatprep.subr.mxu0 0.0
      %928 = vmatpush2.msra.mxu0 0.0
      %929 = vmatprep.subr.mxu0 0.0
      %930 = vmatpush2.msra.mxu0 0.0
      %931 = vmatprep.subr.mxu0 0.0
      %932 = vmatpush2.msra.mxu0 0.0
      %933 = vmatprep.subr.mxu0 0.0
      %934 = vmatpush2.msra.mxu0 0.0
      %935 = vmatprep.subr.mxu0 0.0
      %936 = vmatpush2.msra.mxu0 0.0
      %937 = vmatprep.mubr.f32.mxu0 0.0
      %v938 = vand.u32 %v212, 4294901760
      %939 = vmatmul.mubr.f32.gmra.mxu0 %v938
      %v940 = vpop.f32.mrf.mxu0
      %v941 = vadd.f32 %v827, %v940
      %v942 = vpop.f32.mrf.mxu0
      %943 = vmatprep.mubr.f32.mxu0 0.0
      %v944 = vand.u32 %v215, 4294901760
      %945 = vmatmul.mubr.f32.gmra.mxu0 %v944
      %v946 = vpop.f32.mrf.mxu0
      %v947 = vadd.f32 %v833, %v946
      %v948 = vpop.f32.mrf.mxu0
      %949 = vmatprep.mubr.f32.mxu0 0.0
      %v950 = vand.u32 %v218, 4294901760
      %951 = vmatmul.mubr.f32.gmra.mxu0 %v950
      %v952 = vpop.f32.mrf.mxu0
      %v953 = vadd.f32 %v839, %v952
      %v954 = vpop.f32.mrf.mxu0
      %955 = vmatprep.mubr.f32.mxu0 0.0
      %v956 = vand.u32 %v221, 4294901760
      %957 = vmatmul.mubr.f32.gmra.mxu0 %v956
      %v958 = vpop.f32.mrf.mxu0
      %v959 = vadd.f32 %v845, %v958
      %v960 = vpop.f32.mrf.mxu0
      %961 = vmatprep.mubr.f32.mxu0 0.0
      %v962 = vand.u32 %v224, 4294901760
      %963 = vmatmul.mubr.f32.gmra.mxu0 %v962
      %v964 = vpop.f32.mrf.mxu0
      %v965 = vadd.f32 %v851, %v964
      %v966 = vpop.f32.mrf.mxu0
      %967 = vmatprep.mubr.f32.mxu0 0.0
      %v968 = vand.u32 %v227, 4294901760
      %969 = vmatmul.mubr.f32.gmra.mxu0 %v968
      %v970 = vpop.f32.mrf.mxu0
      %v971 = vadd.f32 %v857, %v970
      %v972 = vpop.f32.mrf.mxu0
      %973 = vmatprep.mubr.f32.mxu0 0.0
      %v974 = vand.u32 %v230, 4294901760
      %975 = vmatmul.mubr.f32.gmra.mxu0 %v974
      %v976 = vpop.f32.mrf.mxu0
      %v977 = vadd.f32 %v863, %v976
      %v978 = vpop.f32.mrf.mxu0
      %979 = vmatprep.mubr.f32.mxu0 0.0
      %v980 = vand.u32 %v233, 4294901760
      %981 = vmatmul.mubr.f32.gmra.mxu0 %v980
      %v982 = vpop.f32.mrf.mxu0
      %v983 = vadd.f32 %v869, %v982
      %v984 = vpop.f32.mrf.mxu0
      %985 = vdwg.mxu0
      %v986 = vand.u32 2147483647, %v941
      %vm987 = vcmp.le.f32.partialorder %v986, 0.7853982
      %vm988 = vcmp.lt.s32.totalorder %v941, 0
      %v989 = vand.u32 %v941, 2139095040
      %v990 = vshrl.u32 %v989, 23
      %v991 = vsub.s32 %v990, 127
      %v992 = vand.u32 2147483647, %v941
      %v993 = vand.u32 %v992, 8388607
      %v994 = vor.u32 %v993, 8388608
      %v995 = vsub.s32 0, %v994
      %v996 = vadd.s32 %v991, 1
      %vm997 = vcmp.gt.s32.totalorder %v996, 0
      %v998 = vsel %vm997, %v996, 0
      %v999 = vshrl.u32 %v998, 5
      %v1000 = vand.u32 %v998, 31
      %v1001 = vsub.s32 32, %v1000
      %v1002 = vshrl.u32 683565275, %v1001
      %v1003 = vshll.u32 683565275, %v1000
      %v1004 = vshrl.u32 2475754826, %v1001
      %v1005 = vor.u32 %v1003, %v1004
      %v1006 = vshll.u32 2475754826, %v1000
      %v1007 = vshrl.u32 2131351028, %v1001
      %v1008 = vor.u32 %v1006, %v1007
      %v1009 = vshll.u32 2131351028, %v1000
      %v1010 = vshrl.u32 2102212464, %v1001
      %v1011 = vor.u32 %v1009, %v1010
      %v1012 = vshll.u32 2102212464, %v1000
      %v1013 = vshrl.u32 920167782, %v1001
      %v1014 = vor.u32 %v1012, %v1013
      %v1015 = vshll.u32 920167782, %v1000
      %v1016 = vshrl.u32 1326507024, %v1001
      %v1017 = vor.u32 %v1015, %v1016
      %vm1018 = vcmp.lt.s32.totalorder %v999, 1
      %vm1019 = vcmp.lt.s32.totalorder %v999, 2
      %vm1020 = vcmp.lt.s32.totalorder %v999, 3
      %vm1021 = vcmp.lt.s32.totalorder %v999, 4
      %v1022 = vsel %vm1018, %v1002, %v1005
      %v1023 = vsel %vm1021, %v1011, 2102212464
      %v1024 = vsel %vm1020, %v1008, %v1023
      %v1025 = vsel %vm1019, %v1022, %v1024
      %v1026 = vsel %vm1018, %v1005, %v1008
      %v1027 = vsel %vm1021, %v1014, 920167782
      %v1028 = vsel %vm1020, %v1011, %v1027
      %v1029 = vsel %vm1019, %v1026, %v1028
      %v1030 = vsel %vm1018, %v1008, %v1011
      %v1031 = vsel %vm1021, %v1017, 1326507024
      %v1032 = vsel %vm1020, %v1014, %v1031
      %v1033 = vsel %vm1019, %v1030, %v1032
      %v1034 = vshll.u32 %v994, 8
      %v1035 = vmul.u32.u64.compose %v1034, %v1033
      %v1036 = vextract.low.u32 %v1035
      %v1037 = vextract.high.u32 %v1035
      %v1038 = vmul.u32.u64.compose %v1034, %v1029
      %v1039 = vextract.low.u32 %v1038
      %v1040 = vextract.high.u32 %v1038
      %v1041 = vmul.u32 %v1034, %v1025
      %v1042 = vadd.s32 %v1037, %v1039
      %vm1043 = vc.u32 %v1037, %v1039
      %v1044 = vadd.s32 %v1040, 1
      %v1045 = vsel %vm1043, %v1044, %v1040
      %v1046 = vadd.s32 %v1041, %v1045
      %v1047 = vadd.s32 %v1046, 536870912
      %v1048 = vshrl.u32 %v1047, 30
      %v1049 = vshll.u32 %v1048, 30
      %v1050 = vsub.s32 %v1046, %v1049
      %vm1051 = vcmp.lt.s32.totalorder %v1050, 0
      %v1052 = vsub.s32 0, %v1050
      %v1053 = vsel %vm1051, %v1052, %v1050
      %v1054 = vclz %v1053
      %v1055 = vsub.s32 %v1054, 2
      %vm1056 = vcmp.gt.s32.totalorder 0, %v1055
      %v1057 = vsel %vm1056, 0, %v1055
      %v1058 = vsub.s32 32, %v1057
      %v1059 = vshll.u32 %v1050, %v1057
      %v1060 = vshrl.u32 %v1042, %v1058
      %v1061 = vor.u32 %v1059, %v1060
      %v1062 = vsub.s32 4294967266, %v1057
      %v1063 = vadd.s32 %v1062, 127
      %v1064 = vshll.u32 %v1063, 23
      %v1065 = vor.u32 4788187, %v1064
      %v1066 = vand.u32 2147483647, %v1065
      %v1068 = vcvt.s32.f32 %v1061
      %v1069 = vmul.f32 %v1068, %v1066
      %v1070 = vxor.u32 %v1069, 2147483648
      %v1071 = vsel %vm988, %v1070, %v1069
      %v1072 = vsub.s32 4, %v1048
      %v1073 = vsel %vm988, %v1072, %v1048
      %v1074 = vsel %vm987, %v941, %v1071
      %v1075 = vsel %vm987, 0, %v1073
      %v1076 = vcosq.f32.pop %v1074
      %v1077 = vsinq.f32.pop %v1074
      %vm1078 = vweird.f32 %v941
      %v1079 = vadd.s32 %v1075, 3
      %v1080 = vand.u32 %v1079, 3
      %vm1081 = vcmp.lt.s32.totalorder %v1080, 2
      %vm1082 = vcmp.eq.s32.totalorder %v1080, 0
      %v1083 = vxor.u32 %v1077, 2147483648
      %v1084 = vsel %vm1082, %v1076, %v1083
      %vm1085 = vcmp.eq.s32.totalorder %v1080, 2
      %v1086 = vxor.u32 %v1076, 2147483648
      %v1087 = vsel %vm1085, %v1086, %v1077
      %v1088 = vsel %vm1081, %v1084, %v1087
      %v1089 = vsel %vm1078, nan, %v1088
      %v1090 = vand.u32 2147483647, %v947
      %vm1091 = vcmp.le.f32.partialorder %v1090, 0.7853982
      %vm1092 = vcmp.lt.s32.totalorder %v947, 0
      %v1093 = vand.u32 %v947, 2139095040
      %v1094 = vshrl.u32 %v1093, 23
      %v1095 = vsub.s32 %v1094, 127
      %v1096 = vand.u32 2147483647, %v947
      %v1097 = vand.u32 %v1096, 8388607
      %v1098 = vor.u32 %v1097, 8388608
      %v1099 = vsub.s32 0, %v1098
      %v1100 = vadd.s32 %v1095, 1
      %vm1101 = vcmp.gt.s32.totalorder %v1100, 0
      %v1102 = vsel %vm1101, %v1100, 0
      %v1103 = vshrl.u32 %v1102, 5
      %v1104 = vand.u32 %v1102, 31
      %v1105 = vsub.s32 32, %v1104
      %v1106 = vshrl.u32 683565275, %v1105
      %v1107 = vshll.u32 683565275, %v1104
      %v1108 = vshrl.u32 2475754826, %v1105
      %v1109 = vor.u32 %v1107, %v1108
      %v1110 = vshll.u32 2475754826, %v1104
      %v1111 = vshrl.u32 2131351028, %v1105
      %v1112 = vor.u32 %v1110, %v1111
      %v1113 = vshll.u32 2131351028, %v1104
      %v1114 = vshrl.u32 2102212464, %v1105
      %v1115 = vor.u32 %v1113, %v1114
      %v1116 = vshll.u32 2102212464, %v1104
      %v1117 = vshrl.u32 920167782, %v1105
      %v1118 = vor.u32 %v1116, %v1117
      %v1119 = vshll.u32 920167782, %v1104
      %v1120 = vshrl.u32 1326507024, %v1105
      %v1121 = vor.u32 %v1119, %v1120
      %vm1122 = vcmp.lt.s32.totalorder %v1103, 1
      %vm1123 = vcmp.lt.s32.totalorder %v1103, 2
      %vm1124 = vcmp.lt.s32.totalorder %v1103, 3
      %vm1125 = vcmp.lt.s32.totalorder %v1103, 4
      %v1126 = vsel %vm1122, %v1106, %v1109
      %v1127 = vsel %vm1125, %v1115, 2102212464
      %v1128 = vsel %vm1124, %v1112, %v1127
      %v1129 = vsel %vm1123, %v1126, %v1128
      %v1130 = vsel %vm1122, %v1109, %v1112
      %v1131 = vsel %vm1125, %v1118, 920167782
      %v1132 = vsel %vm1124, %v1115, %v1131
      %v1133 = vsel %vm1123, %v1130, %v1132
      %v1134 = vsel %vm1122, %v1112, %v1115
      %v1135 = vsel %vm1125, %v1121, 1326507024
      %v1136 = vsel %vm1124, %v1118, %v1135
      %v1137 = vsel %vm1123, %v1134, %v1136
      %v1138 = vshll.u32 %v1098, 8
      %v1139 = vmul.u32.u64.compose %v1138, %v1137
      %v1140 = vextract.low.u32 %v1139
      %v1141 = vextract.high.u32 %v1139
      %v1142 = vmul.u32.u64.compose %v1138, %v1133
      %v1143 = vextract.low.u32 %v1142
      %v1144 = vextract.high.u32 %v1142
      %v1145 = vmul.u32 %v1138, %v1129
      %v1146 = vadd.s32 %v1141, %v1143
      %vm1147 = vc.u32 %v1141, %v1143
      %v1148 = vadd.s32 %v1144, 1
      %v1149 = vsel %vm1147, %v1148, %v1144
      %v1150 = vadd.s32 %v1145, %v1149
      %v1151 = vadd.s32 %v1150, 536870912
      %v1152 = vshrl.u32 %v1151, 30
      %v1153 = vshll.u32 %v1152, 30
      %v1154 = vsub.s32 %v1150, %v1153
      %vm1155 = vcmp.lt.s32.totalorder %v1154, 0
      %v1156 = vsub.s32 0, %v1154
      %v1157 = vsel %vm1155, %v1156, %v1154
      %v1158 = vclz %v1157
      %v1159 = vsub.s32 %v1158, 2
      %vm1160 = vcmp.gt.s32.totalorder 0, %v1159
      %v1161 = vsel %vm1160, 0, %v1159
      %v1162 = vsub.s32 32, %v1161
      %v1163 = vshll.u32 %v1154, %v1161
      %v1164 = vshrl.u32 %v1146, %v1162
      %v1165 = vor.u32 %v1163, %v1164
      %v1166 = vsub.s32 4294967266, %v1161
      %v1167 = vadd.s32 %v1166, 127
      %v1168 = vshll.u32 %v1167, 23
      %v1169 = vor.u32 4788187, %v1168
      %v1170 = vand.u32 2147483647, %v1169
      %v1172 = vcvt.s32.f32 %v1165
      %v1173 = vmul.f32 %v1172, %v1170
      %v1174 = vxor.u32 %v1173, 2147483648
      %v1175 = vsel %vm1092, %v1174, %v1173
      %v1176 = vsub.s32 4, %v1152
      %v1177 = vsel %vm1092, %v1176, %v1152
      %v1178 = vsel %vm1091, %v947, %v1175
      %v1179 = vsel %vm1091, 0, %v1177
      %v1180 = vcosq.f32.pop %v1178
      %v1181 = vsinq.f32.pop %v1178
      %vm1182 = vweird.f32 %v947
      %v1183 = vadd.s32 %v1179, 3
      %v1184 = vand.u32 %v1183, 3
      %vm1185 = vcmp.lt.s32.totalorder %v1184, 2
      %vm1186 = vcmp.eq.s32.totalorder %v1184, 0
      %v1187 = vxor.u32 %v1181, 2147483648
      %v1188 = vsel %vm1186, %v1180, %v1187
      %vm1189 = vcmp.eq.s32.totalorder %v1184, 2
      %v1190 = vxor.u32 %v1180, 2147483648
      %v1191 = vsel %vm1189, %v1190, %v1181
      %v1192 = vsel %vm1185, %v1188, %v1191
      %v1193 = vsel %vm1182, nan, %v1192
      %v1194 = vand.u32 2147483647, %v953
      %vm1195 = vcmp.le.f32.partialorder %v1194, 0.7853982
      %vm1196 = vcmp.lt.s32.totalorder %v953, 0
      %v1197 = vand.u32 %v953, 2139095040
      %v1198 = vshrl.u32 %v1197, 23
      %v1199 = vsub.s32 %v1198, 127
      %v1200 = vand.u32 2147483647, %v953
      %v1201 = vand.u32 %v1200, 8388607
      %v1202 = vor.u32 %v1201, 8388608
      %v1203 = vsub.s32 0, %v1202
      %v1204 = vadd.s32 %v1199, 1
      %vm1205 = vcmp.gt.s32.totalorder %v1204, 0
      %v1206 = vsel %vm1205, %v1204, 0
      %v1207 = vshrl.u32 %v1206, 5
      %v1208 = vand.u32 %v1206, 31
      %v1209 = vsub.s32 32, %v1208
      %v1210 = vshrl.u32 683565275, %v1209
      %v1211 = vshll.u32 683565275, %v1208
      %v1212 = vshrl.u32 2475754826, %v1209
      %v1213 = vor.u32 %v1211, %v1212
      %v1214 = vshll.u32 2475754826, %v1208
      %v1215 = vshrl.u32 2131351028, %v1209
      %v1216 = vor.u32 %v1214, %v1215
      %v1217 = vshll.u32 2131351028, %v1208
      %v1218 = vshrl.u32 2102212464, %v1209
      %v1219 = vor.u32 %v1217, %v1218
      %v1220 = vshll.u32 2102212464, %v1208
      %v1221 = vshrl.u32 920167782, %v1209
      %v1222 = vor.u32 %v1220, %v1221
      %v1223 = vshll.u32 920167782, %v1208
      %v1224 = vshrl.u32 1326507024, %v1209
      %v1225 = vor.u32 %v1223, %v1224
      %vm1226 = vcmp.lt.s32.totalorder %v1207, 1
      %vm1227 = vcmp.lt.s32.totalorder %v1207, 2
      %vm1228 = vcmp.lt.s32.totalorder %v1207, 3
      %vm1229 = vcmp.lt.s32.totalorder %v1207, 4
      %v1230 = vsel %vm1226, %v1210, %v1213
      %v1231 = vsel %vm1229, %v1219, 2102212464
      %v1232 = vsel %vm1228, %v1216, %v1231
      %v1233 = vsel %vm1227, %v1230, %v1232
      %v1234 = vsel %vm1226, %v1213, %v1216
      %v1235 = vsel %vm1229, %v1222, 920167782
      %v1236 = vsel %vm1228, %v1219, %v1235
      %v1237 = vsel %vm1227, %v1234, %v1236
      %v1238 = vsel %vm1226, %v1216, %v1219
      %v1239 = vsel %vm1229, %v1225, 1326507024
      %v1240 = vsel %vm1228, %v1222, %v1239
      %v1241 = vsel %vm1227, %v1238, %v1240
      %v1242 = vshll.u32 %v1202, 8
      %v1243 = vmul.u32.u64.compose %v1242, %v1241
      %v1244 = vextract.low.u32 %v1243
      %v1245 = vextract.high.u32 %v1243
      %v1246 = vmul.u32.u64.compose %v1242, %v1237
      %v1247 = vextract.low.u32 %v1246
      %v1248 = vextract.high.u32 %v1246
      %v1249 = vmul.u32 %v1242, %v1233
      %v1250 = vadd.s32 %v1245, %v1247
      %vm1251 = vc.u32 %v1245, %v1247
      %v1252 = vadd.s32 %v1248, 1
      %v1253 = vsel %vm1251, %v1252, %v1248
      %v1254 = vadd.s32 %v1249, %v1253
      %v1255 = vadd.s32 %v1254, 536870912
      %v1256 = vshrl.u32 %v1255, 30
      %v1257 = vshll.u32 %v1256, 30
      %v1258 = vsub.s32 %v1254, %v1257
      %vm1259 = vcmp.lt.s32.totalorder %v1258, 0
      %v1260 = vsub.s32 0, %v1258
      %v1261 = vsel %vm1259, %v1260, %v1258
      %v1262 = vclz %v1261
      %v1263 = vsub.s32 %v1262, 2
      %vm1264 = vcmp.gt.s32.totalorder 0, %v1263
      %v1265 = vsel %vm1264, 0, %v1263
      %v1266 = vsub.s32 32, %v1265
      %v1267 = vshll.u32 %v1258, %v1265
      %v1268 = vshrl.u32 %v1250, %v1266
      %v1269 = vor.u32 %v1267, %v1268
      %v1270 = vsub.s32 4294967266, %v1265
      %v1271 = vadd.s32 %v1270, 127
      %v1272 = vshll.u32 %v1271, 23
      %v1273 = vor.u32 4788187, %v1272
      %v1274 = vand.u32 2147483647, %v1273
      %v1276 = vcvt.s32.f32 %v1269
      %v1277 = vmul.f32 %v1276, %v1274
      %v1278 = vxor.u32 %v1277, 2147483648
      %v1279 = vsel %vm1196, %v1278, %v1277
      %v1280 = vsub.s32 4, %v1256
      %v1281 = vsel %vm1196, %v1280, %v1256
      %v1282 = vsel %vm1195, %v953, %v1279
      %v1283 = vsel %vm1195, 0, %v1281
      %v1284 = vcosq.f32.pop %v1282
      %v1285 = vsinq.f32.pop %v1282
      %vm1286 = vweird.f32 %v953
      %v1287 = vadd.s32 %v1283, 3
      %v1288 = vand.u32 %v1287, 3
      %vm1289 = vcmp.lt.s32.totalorder %v1288, 2
      %vm1290 = vcmp.eq.s32.totalorder %v1288, 0
      %v1291 = vxor.u32 %v1285, 2147483648
      %v1292 = vsel %vm1290, %v1284, %v1291
      %vm1293 = vcmp.eq.s32.totalorder %v1288, 2
      %v1294 = vxor.u32 %v1284, 2147483648
      %v1295 = vsel %vm1293, %v1294, %v1285
      %v1296 = vsel %vm1289, %v1292, %v1295
      %v1297 = vsel %vm1286, nan, %v1296
      %v1298 = vand.u32 2147483647, %v959
      %vm1299 = vcmp.le.f32.partialorder %v1298, 0.7853982
      %vm1300 = vcmp.lt.s32.totalorder %v959, 0
      %v1301 = vand.u32 %v959, 2139095040
      %v1302 = vshrl.u32 %v1301, 23
      %v1303 = vsub.s32 %v1302, 127
      %v1304 = vand.u32 2147483647, %v959
      %v1305 = vand.u32 %v1304, 8388607
      %v1306 = vor.u32 %v1305, 8388608
      %v1307 = vsub.s32 0, %v1306
      %v1308 = vadd.s32 %v1303, 1
      %vm1309 = vcmp.gt.s32.totalorder %v1308, 0
      %v1310 = vsel %vm1309, %v1308, 0
      %v1311 = vshrl.u32 %v1310, 5
      %v1312 = vand.u32 %v1310, 31
      %v1313 = vsub.s32 32, %v1312
      %v1314 = vshrl.u32 683565275, %v1313
      %v1315 = vshll.u32 683565275, %v1312
      %v1316 = vshrl.u32 2475754826, %v1313
      %v1317 = vor.u32 %v1315, %v1316
      %v1318 = vshll.u32 2475754826, %v1312
      %v1319 = vshrl.u32 2131351028, %v1313
      %v1320 = vor.u32 %v1318, %v1319
      %v1321 = vshll.u32 2131351028, %v1312
      %v1322 = vshrl.u32 2102212464, %v1313
      %v1323 = vor.u32 %v1321, %v1322
      %v1324 = vshll.u32 2102212464, %v1312
      %v1325 = vshrl.u32 920167782, %v1313
      %v1326 = vor.u32 %v1324, %v1325
      %v1327 = vshll.u32 920167782, %v1312
      %v1328 = vshrl.u32 1326507024, %v1313
      %v1329 = vor.u32 %v1327, %v1328
      %vm1330 = vcmp.lt.s32.totalorder %v1311, 1
      %vm1331 = vcmp.lt.s32.totalorder %v1311, 2
      %vm1332 = vcmp.lt.s32.totalorder %v1311, 3
      %vm1333 = vcmp.lt.s32.totalorder %v1311, 4
      %v1334 = vsel %vm1330, %v1314, %v1317
      %v1335 = vsel %vm1333, %v1323, 2102212464
      %v1336 = vsel %vm1332, %v1320, %v1335
      %v1337 = vsel %vm1331, %v1334, %v1336
      %v1338 = vsel %vm1330, %v1317, %v1320
      %v1339 = vsel %vm1333, %v1326, 920167782
      %v1340 = vsel %vm1332, %v1323, %v1339
      %v1341 = vsel %vm1331, %v1338, %v1340
      %v1342 = vsel %vm1330, %v1320, %v1323
      %v1343 = vsel %vm1333, %v1329, 1326507024
      %v1344 = vsel %vm1332, %v1326, %v1343
      %v1345 = vsel %vm1331, %v1342, %v1344
      %v1346 = vshll.u32 %v1306, 8
      %v1347 = vmul.u32.u64.compose %v1346, %v1345
      %v1348 = vextract.low.u32 %v1347
      %v1349 = vextract.high.u32 %v1347
      %v1350 = vmul.u32.u64.compose %v1346, %v1341
      %v1351 = vextract.low.u32 %v1350
      %v1352 = vextract.high.u32 %v1350
      %v1353 = vmul.u32 %v1346, %v1337
      %v1354 = vadd.s32 %v1349, %v1351
      %vm1355 = vc.u32 %v1349, %v1351
      %v1356 = vadd.s32 %v1352, 1
      %v1357 = vsel %vm1355, %v1356, %v1352
      %v1358 = vadd.s32 %v1353, %v1357
      %v1359 = vadd.s32 %v1358, 536870912
      %v1360 = vshrl.u32 %v1359, 30
      %v1361 = vshll.u32 %v1360, 30
      %v1362 = vsub.s32 %v1358, %v1361
      %vm1363 = vcmp.lt.s32.totalorder %v1362, 0
      %v1364 = vsub.s32 0, %v1362
      %v1365 = vsel %vm1363, %v1364, %v1362
      %v1366 = vclz %v1365
      %v1367 = vsub.s32 %v1366, 2
      %vm1368 = vcmp.gt.s32.totalorder 0, %v1367
      %v1369 = vsel %vm1368, 0, %v1367
      %v1370 = vsub.s32 32, %v1369
      %v1371 = vshll.u32 %v1362, %v1369
      %v1372 = vshrl.u32 %v1354, %v1370
      %v1373 = vor.u32 %v1371, %v1372
      %v1374 = vsub.s32 4294967266, %v1369
      %v1375 = vadd.s32 %v1374, 127
      %v1376 = vshll.u32 %v1375, 23
      %v1377 = vor.u32 4788187, %v1376
      %v1378 = vand.u32 2147483647, %v1377
      %v1380 = vcvt.s32.f32 %v1373
      %v1381 = vmul.f32 %v1380, %v1378
      %v1382 = vxor.u32 %v1381, 2147483648
      %v1383 = vsel %vm1300, %v1382, %v1381
      %v1384 = vsub.s32 4, %v1360
      %v1385 = vsel %vm1300, %v1384, %v1360
      %v1386 = vsel %vm1299, %v959, %v1383
      %v1387 = vsel %vm1299, 0, %v1385
      %v1388 = vcosq.f32.pop %v1386
      %v1389 = vsinq.f32.pop %v1386
      %vm1390 = vweird.f32 %v959
      %v1391 = vadd.s32 %v1387, 3
      %v1392 = vand.u32 %v1391, 3
      %vm1393 = vcmp.lt.s32.totalorder %v1392, 2
      %vm1394 = vcmp.eq.s32.totalorder %v1392, 0
      %v1395 = vxor.u32 %v1389, 2147483648
      %v1396 = vsel %vm1394, %v1388, %v1395
      %vm1397 = vcmp.eq.s32.totalorder %v1392, 2
      %v1398 = vxor.u32 %v1388, 2147483648
      %v1399 = vsel %vm1397, %v1398, %v1389
      %v1400 = vsel %vm1393, %v1396, %v1399
      %v1401 = vsel %vm1390, nan, %v1400
      %v1402 = vand.u32 2147483647, %v965
      %vm1403 = vcmp.le.f32.partialorder %v1402, 0.7853982
      %vm1404 = vcmp.lt.s32.totalorder %v965, 0
      %v1405 = vand.u32 %v965, 2139095040
      %v1406 = vshrl.u32 %v1405, 23
      %v1407 = vsub.s32 %v1406, 127
      %v1408 = vand.u32 2147483647, %v965
      %v1409 = vand.u32 %v1408, 8388607
      %v1410 = vor.u32 %v1409, 8388608
      %v1411 = vsub.s32 0, %v1410
      %v1412 = vadd.s32 %v1407, 1
      %vm1413 = vcmp.gt.s32.totalorder %v1412, 0
      %v1414 = vsel %vm1413, %v1412, 0
      %v1415 = vshrl.u32 %v1414, 5
      %v1416 = vand.u32 %v1414, 31
      %v1417 = vsub.s32 32, %v1416
      %v1418 = vshrl.u32 683565275, %v1417
      %v1419 = vshll.u32 683565275, %v1416
      %v1420 = vshrl.u32 2475754826, %v1417
      %v1421 = vor.u32 %v1419, %v1420
      %v1422 = vshll.u32 2475754826, %v1416
      %v1423 = vshrl.u32 2131351028, %v1417
      %v1424 = vor.u32 %v1422, %v1423
      %v1425 = vshll.u32 2131351028, %v1416
      %v1426 = vshrl.u32 2102212464, %v1417
      %v1427 = vor.u32 %v1425, %v1426
      %v1428 = vshll.u32 2102212464, %v1416
      %v1429 = vshrl.u32 920167782, %v1417
      %v1430 = vor.u32 %v1428, %v1429
      %v1431 = vshll.u32 920167782, %v1416
      %v1432 = vshrl.u32 1326507024, %v1417
      %v1433 = vor.u32 %v1431, %v1432
      %vm1434 = vcmp.lt.s32.totalorder %v1415, 1
      %vm1435 = vcmp.lt.s32.totalorder %v1415, 2
      %vm1436 = vcmp.lt.s32.totalorder %v1415, 3
      %vm1437 = vcmp.lt.s32.totalorder %v1415, 4
      %v1438 = vsel %vm1434, %v1418, %v1421
      %v1439 = vsel %vm1437, %v1427, 2102212464
      %v1440 = vsel %vm1436, %v1424, %v1439
      %v1441 = vsel %vm1435, %v1438, %v1440
      %v1442 = vsel %vm1434, %v1421, %v1424
      %v1443 = vsel %vm1437, %v1430, 920167782
      %v1444 = vsel %vm1436, %v1427, %v1443
      %v1445 = vsel %vm1435, %v1442, %v1444
      %v1446 = vsel %vm1434, %v1424, %v1427
      %v1447 = vsel %vm1437, %v1433, 1326507024
      %v1448 = vsel %vm1436, %v1430, %v1447
      %v1449 = vsel %vm1435, %v1446, %v1448
      %v1450 = vshll.u32 %v1410, 8
      %v1451 = vmul.u32.u64.compose %v1450, %v1449
      %v1452 = vextract.low.u32 %v1451
      %v1453 = vextract.high.u32 %v1451
      %v1454 = vmul.u32.u64.compose %v1450, %v1445
      %v1455 = vextract.low.u32 %v1454
      %v1456 = vextract.high.u32 %v1454
      %v1457 = vmul.u32 %v1450, %v1441
      %v1458 = vadd.s32 %v1453, %v1455
      %vm1459 = vc.u32 %v1453, %v1455
      %v1460 = vadd.s32 %v1456, 1
      %v1461 = vsel %vm1459, %v1460, %v1456
      %v1462 = vadd.s32 %v1457, %v1461
      %v1463 = vadd.s32 %v1462, 536870912
      %v1464 = vshrl.u32 %v1463, 30
      %v1465 = vshll.u32 %v1464, 30
      %v1466 = vsub.s32 %v1462, %v1465
      %vm1467 = vcmp.lt.s32.totalorder %v1466, 0
      %v1468 = vsub.s32 0, %v1466
      %v1469 = vsel %vm1467, %v1468, %v1466
      %v1470 = vclz %v1469
      %v1471 = vsub.s32 %v1470, 2
      %vm1472 = vcmp.gt.s32.totalorder 0, %v1471
      %v1473 = vsel %vm1472, 0, %v1471
      %v1474 = vsub.s32 32, %v1473
      %v1475 = vshll.u32 %v1466, %v1473
      %v1476 = vshrl.u32 %v1458, %v1474
      %v1477 = vor.u32 %v1475, %v1476
      %v1478 = vsub.s32 4294967266, %v1473
      %v1479 = vadd.s32 %v1478, 127
      %v1480 = vshll.u32 %v1479, 23
      %v1481 = vor.u32 4788187, %v1480
      %v1482 = vand.u32 2147483647, %v1481
      %v1484 = vcvt.s32.f32 %v1477
      %v1485 = vmul.f32 %v1484, %v1482
      %v1486 = vxor.u32 %v1485, 2147483648
      %v1487 = vsel %vm1404, %v1486, %v1485
      %v1488 = vsub.s32 4, %v1464
      %v1489 = vsel %vm1404, %v1488, %v1464
      %v1490 = vsel %vm1403, %v965, %v1487
      %v1491 = vsel %vm1403, 0, %v1489
      %v1492 = vcosq.f32.pop %v1490
      %v1493 = vsinq.f32.pop %v1490
      %vm1494 = vweird.f32 %v965
      %v1495 = vadd.s32 %v1491, 3
      %v1496 = vand.u32 %v1495, 3
      %vm1497 = vcmp.lt.s32.totalorder %v1496, 2
      %vm1498 = vcmp.eq.s32.totalorder %v1496, 0
      %v1499 = vxor.u32 %v1493, 2147483648
      %v1500 = vsel %vm1498, %v1492, %v1499
      %vm1501 = vcmp.eq.s32.totalorder %v1496, 2
      %v1502 = vxor.u32 %v1492, 2147483648
      %v1503 = vsel %vm1501, %v1502, %v1493
      %v1504 = vsel %vm1497, %v1500, %v1503
      %v1505 = vsel %vm1494, nan, %v1504
      %v1506 = vand.u32 2147483647, %v971
      %vm1507 = vcmp.le.f32.partialorder %v1506, 0.7853982
      %vm1508 = vcmp.lt.s32.totalorder %v971, 0
      %v1509 = vand.u32 %v971, 2139095040
      %v1510 = vshrl.u32 %v1509, 23
      %v1511 = vsub.s32 %v1510, 127
      %v1512 = vand.u32 2147483647, %v971
      %v1513 = vand.u32 %v1512, 8388607
      %v1514 = vor.u32 %v1513, 8388608
      %v1515 = vsub.s32 0, %v1514
      %v1516 = vadd.s32 %v1511, 1
      %vm1517 = vcmp.gt.s32.totalorder %v1516, 0
      %v1518 = vsel %vm1517, %v1516, 0
      %v1519 = vshrl.u32 %v1518, 5
      %v1520 = vand.u32 %v1518, 31
      %v1521 = vsub.s32 32, %v1520
      %v1522 = vshrl.u32 683565275, %v1521
      %v1523 = vshll.u32 683565275, %v1520
      %v1524 = vshrl.u32 2475754826, %v1521
      %v1525 = vor.u32 %v1523, %v1524
      %v1526 = vshll.u32 2475754826, %v1520
      %v1527 = vshrl.u32 2131351028, %v1521
      %v1528 = vor.u32 %v1526, %v1527
      %v1529 = vshll.u32 2131351028, %v1520
      %v1530 = vshrl.u32 2102212464, %v1521
      %v1531 = vor.u32 %v1529, %v1530
      %v1532 = vshll.u32 2102212464, %v1520
      %v1533 = vshrl.u32 920167782, %v1521
      %v1534 = vor.u32 %v1532, %v1533
      %v1535 = vshll.u32 920167782, %v1520
      %v1536 = vshrl.u32 1326507024, %v1521
      %v1537 = vor.u32 %v1535, %v1536
      %vm1538 = vcmp.lt.s32.totalorder %v1519, 1
      %vm1539 = vcmp.lt.s32.totalorder %v1519, 2
      %vm1540 = vcmp.lt.s32.totalorder %v1519, 3
      %vm1541 = vcmp.lt.s32.totalorder %v1519, 4
      %v1542 = vsel %vm1538, %v1522, %v1525
      %v1543 = vsel %vm1541, %v1531, 2102212464
      %v1544 = vsel %vm1540, %v1528, %v1543
      %v1545 = vsel %vm1539, %v1542, %v1544
      %v1546 = vsel %vm1538, %v1525, %v1528
      %v1547 = vsel %vm1541, %v1534, 920167782
      %v1548 = vsel %vm1540, %v1531, %v1547
      %v1549 = vsel %vm1539, %v1546, %v1548
      %v1550 = vsel %vm1538, %v1528, %v1531
      %v1551 = vsel %vm1541, %v1537, 1326507024
      %v1552 = vsel %vm1540, %v1534, %v1551
      %v1553 = vsel %vm1539, %v1550, %v1552
      %v1554 = vshll.u32 %v1514, 8
      %v1555 = vmul.u32.u64.compose %v1554, %v1553
      %v1556 = vextract.low.u32 %v1555
      %v1557 = vextract.high.u32 %v1555
      %v1558 = vmul.u32.u64.compose %v1554, %v1549
      %v1559 = vextract.low.u32 %v1558
      %v1560 = vextract.high.u32 %v1558
      %v1561 = vmul.u32 %v1554, %v1545
      %v1562 = vadd.s32 %v1557, %v1559
      %vm1563 = vc.u32 %v1557, %v1559
      %v1564 = vadd.s32 %v1560, 1
      %v1565 = vsel %vm1563, %v1564, %v1560
      %v1566 = vadd.s32 %v1561, %v1565
      %v1567 = vadd.s32 %v1566, 536870912
      %v1568 = vshrl.u32 %v1567, 30
      %v1569 = vshll.u32 %v1568, 30
      %v1570 = vsub.s32 %v1566, %v1569
      %vm1571 = vcmp.lt.s32.totalorder %v1570, 0
      %v1572 = vsub.s32 0, %v1570
      %v1573 = vsel %vm1571, %v1572, %v1570
      %v1574 = vclz %v1573
      %v1575 = vsub.s32 %v1574, 2
      %vm1576 = vcmp.gt.s32.totalorder 0, %v1575
      %v1577 = vsel %vm1576, 0, %v1575
      %v1578 = vsub.s32 32, %v1577
      %v1579 = vshll.u32 %v1570, %v1577
      %v1580 = vshrl.u32 %v1562, %v1578
      %v1581 = vor.u32 %v1579, %v1580
      %v1582 = vsub.s32 4294967266, %v1577
      %v1583 = vadd.s32 %v1582, 127
      %v1584 = vshll.u32 %v1583, 23
      %v1585 = vor.u32 4788187, %v1584
      %v1586 = vand.u32 2147483647, %v1585
      %v1588 = vcvt.s32.f32 %v1581
      %v1589 = vmul.f32 %v1588, %v1586
      %v1590 = vxor.u32 %v1589, 2147483648
      %v1591 = vsel %vm1508, %v1590, %v1589
      %v1592 = vsub.s32 4, %v1568
      %v1593 = vsel %vm1508, %v1592, %v1568
      %v1594 = vsel %vm1507, %v971, %v1591
      %v1595 = vsel %vm1507, 0, %v1593
      %v1596 = vcosq.f32.pop %v1594
      %v1597 = vsinq.f32.pop %v1594
      %vm1598 = vweird.f32 %v971
      %v1599 = vadd.s32 %v1595, 3
      %v1600 = vand.u32 %v1599, 3
      %vm1601 = vcmp.lt.s32.totalorder %v1600, 2
      %vm1602 = vcmp.eq.s32.totalorder %v1600, 0
      %v1603 = vxor.u32 %v1597, 2147483648
      %v1604 = vsel %vm1602, %v1596, %v1603
      %vm1605 = vcmp.eq.s32.totalorder %v1600, 2
      %v1606 = vxor.u32 %v1596, 2147483648
      %v1607 = vsel %vm1605, %v1606, %v1597
      %v1608 = vsel %vm1601, %v1604, %v1607
      %v1609 = vsel %vm1598, nan, %v1608
      %v1610 = vand.u32 2147483647, %v977
      %vm1611 = vcmp.le.f32.partialorder %v1610, 0.7853982
      %vm1612 = vcmp.lt.s32.totalorder %v977, 0
      %v1613 = vand.u32 %v977, 2139095040
      %v1614 = vshrl.u32 %v1613, 23
      %v1615 = vsub.s32 %v1614, 127
      %v1616 = vand.u32 2147483647, %v977
      %v1617 = vand.u32 %v1616, 8388607
      %v1618 = vor.u32 %v1617, 8388608
      %v1619 = vsub.s32 0, %v1618
      %v1620 = vadd.s32 %v1615, 1
      %vm1621 = vcmp.gt.s32.totalorder %v1620, 0
      %v1622 = vsel %vm1621, %v1620, 0
      %v1623 = vshrl.u32 %v1622, 5
      %v1624 = vand.u32 %v1622, 31
      %v1625 = vsub.s32 32, %v1624
      %v1626 = vshrl.u32 683565275, %v1625
      %v1627 = vshll.u32 683565275, %v1624
      %v1628 = vshrl.u32 2475754826, %v1625
      %v1629 = vor.u32 %v1627, %v1628
      %v1630 = vshll.u32 2475754826, %v1624
      %v1631 = vshrl.u32 2131351028, %v1625
      %v1632 = vor.u32 %v1630, %v1631
      %v1633 = vshll.u32 2131351028, %v1624
      %v1634 = vshrl.u32 2102212464, %v1625
      %v1635 = vor.u32 %v1633, %v1634
      %v1636 = vshll.u32 2102212464, %v1624
      %v1637 = vshrl.u32 920167782, %v1625
      %v1638 = vor.u32 %v1636, %v1637
      %v1639 = vshll.u32 920167782, %v1624
      %v1640 = vshrl.u32 1326507024, %v1625
      %v1641 = vor.u32 %v1639, %v1640
      %vm1642 = vcmp.lt.s32.totalorder %v1623, 1
      %vm1643 = vcmp.lt.s32.totalorder %v1623, 2
      %vm1644 = vcmp.lt.s32.totalorder %v1623, 3
      %vm1645 = vcmp.lt.s32.totalorder %v1623, 4
      %v1646 = vsel %vm1642, %v1626, %v1629
      %v1647 = vsel %vm1645, %v1635, 2102212464
      %v1648 = vsel %vm1644, %v1632, %v1647
      %v1649 = vsel %vm1643, %v1646, %v1648
      %v1650 = vsel %vm1642, %v1629, %v1632
      %v1651 = vsel %vm1645, %v1638, 920167782
      %v1652 = vsel %vm1644, %v1635, %v1651
      %v1653 = vsel %vm1643, %v1650, %v1652
      %v1654 = vsel %vm1642, %v1632, %v1635
      %v1655 = vsel %vm1645, %v1641, 1326507024
      %v1656 = vsel %vm1644, %v1638, %v1655
      %v1657 = vsel %vm1643, %v1654, %v1656
      %v1658 = vshll.u32 %v1618, 8
      %v1659 = vmul.u32.u64.compose %v1658, %v1657
      %v1660 = vextract.low.u32 %v1659
      %v1661 = vextract.high.u32 %v1659
      %v1662 = vmul.u32.u64.compose %v1658, %v1653
      %v1663 = vextract.low.u32 %v1662
      %v1664 = vextract.high.u32 %v1662
      %v1665 = vmul.u32 %v1658, %v1649
      %v1666 = vadd.s32 %v1661, %v1663
      %vm1667 = vc.u32 %v1661, %v1663
      %v1668 = vadd.s32 %v1664, 1
      %v1669 = vsel %vm1667, %v1668, %v1664
      %v1670 = vadd.s32 %v1665, %v1669
      %v1671 = vadd.s32 %v1670, 536870912
      %v1672 = vshrl.u32 %v1671, 30
      %v1673 = vshll.u32 %v1672, 30
      %v1674 = vsub.s32 %v1670, %v1673
      %vm1675 = vcmp.lt.s32.totalorder %v1674, 0
      %v1676 = vsub.s32 0, %v1674
      %v1677 = vsel %vm1675, %v1676, %v1674
      %v1678 = vclz %v1677
      %v1679 = vsub.s32 %v1678, 2
      %vm1680 = vcmp.gt.s32.totalorder 0, %v1679
      %v1681 = vsel %vm1680, 0, %v1679
      %v1682 = vsub.s32 32, %v1681
      %v1683 = vshll.u32 %v1674, %v1681
      %v1684 = vshrl.u32 %v1666, %v1682
      %v1685 = vor.u32 %v1683, %v1684
      %v1686 = vsub.s32 4294967266, %v1681
      %v1687 = vadd.s32 %v1686, 127
      %v1688 = vshll.u32 %v1687, 23
      %v1689 = vor.u32 4788187, %v1688
      %v1690 = vand.u32 2147483647, %v1689
      %v1692 = vcvt.s32.f32 %v1685
      %v1693 = vmul.f32 %v1692, %v1690
      %v1694 = vxor.u32 %v1693, 2147483648
      %v1695 = vsel %vm1612, %v1694, %v1693
      %v1696 = vsub.s32 4, %v1672
      %v1697 = vsel %vm1612, %v1696, %v1672
      %v1698 = vsel %vm1611, %v977, %v1695
      %v1699 = vsel %vm1611, 0, %v1697
      %v1700 = vcosq.f32.pop %v1698
      %v1701 = vsinq.f32.pop %v1698
      %vm1702 = vweird.f32 %v977
      %v1703 = vadd.s32 %v1699, 3
      %v1704 = vand.u32 %v1703, 3
      %vm1705 = vcmp.lt.s32.totalorder %v1704, 2
      %vm1706 = vcmp.eq.s32.totalorder %v1704, 0
      %v1707 = vxor.u32 %v1701, 2147483648
      %v1708 = vsel %vm1706, %v1700, %v1707
      %vm1709 = vcmp.eq.s32.totalorder %v1704, 2
      %v1710 = vxor.u32 %v1700, 2147483648
      %v1711 = vsel %vm1709, %v1710, %v1701
      %v1712 = vsel %vm1705, %v1708, %v1711
      %v1713 = vsel %vm1702, nan, %v1712
      %v1714 = vand.u32 2147483647, %v983
      %vm1715 = vcmp.le.f32.partialorder %v1714, 0.7853982
      %vm1716 = vcmp.lt.s32.totalorder %v983, 0
      %v1717 = vand.u32 %v983, 2139095040
      %v1718 = vshrl.u32 %v1717, 23
      %v1719 = vsub.s32 %v1718, 127
      %v1720 = vand.u32 2147483647, %v983
      %v1721 = vand.u32 %v1720, 8388607
      %v1722 = vor.u32 %v1721, 8388608
      %v1723 = vsub.s32 0, %v1722
      %v1724 = vadd.s32 %v1719, 1
      %vm1725 = vcmp.gt.s32.totalorder %v1724, 0
      %v1726 = vsel %vm1725, %v1724, 0
      %v1727 = vshrl.u32 %v1726, 5
      %v1728 = vand.u32 %v1726, 31
      %v1729 = vsub.s32 32, %v1728
      %v1730 = vshrl.u32 683565275, %v1729
      %v1731 = vshll.u32 683565275, %v1728
      %v1732 = vshrl.u32 2475754826, %v1729
      %v1733 = vor.u32 %v1731, %v1732
      %v1734 = vshll.u32 2475754826, %v1728
      %v1735 = vshrl.u32 2131351028, %v1729
      %v1736 = vor.u32 %v1734, %v1735
      %v1737 = vshll.u32 2131351028, %v1728
      %v1738 = vshrl.u32 2102212464, %v1729
      %v1739 = vor.u32 %v1737, %v1738
      %v1740 = vshll.u32 2102212464, %v1728
      %v1741 = vshrl.u32 920167782, %v1729
      %v1742 = vor.u32 %v1740, %v1741
      %v1743 = vshll.u32 920167782, %v1728
      %v1744 = vshrl.u32 1326507024, %v1729
      %v1745 = vor.u32 %v1743, %v1744
      %vm1746 = vcmp.lt.s32.totalorder %v1727, 1
      %vm1747 = vcmp.lt.s32.totalorder %v1727, 2
      %vm1748 = vcmp.lt.s32.totalorder %v1727, 3
      %vm1749 = vcmp.lt.s32.totalorder %v1727, 4
      %v1750 = vsel %vm1746, %v1730, %v1733
      %v1751 = vsel %vm1749, %v1739, 2102212464
      %v1752 = vsel %vm1748, %v1736, %v1751
      %v1753 = vsel %vm1747, %v1750, %v1752
      %v1754 = vsel %vm1746, %v1733, %v1736
      %v1755 = vsel %vm1749, %v1742, 920167782
      %v1756 = vsel %vm1748, %v1739, %v1755
      %v1757 = vsel %vm1747, %v1754, %v1756
      %v1758 = vsel %vm1746, %v1736, %v1739
      %v1759 = vsel %vm1749, %v1745, 1326507024
      %v1760 = vsel %vm1748, %v1742, %v1759
      %v1761 = vsel %vm1747, %v1758, %v1760
      %v1762 = vshll.u32 %v1722, 8
      %v1763 = vmul.u32.u64.compose %v1762, %v1761
      %v1764 = vextract.low.u32 %v1763
      %v1765 = vextract.high.u32 %v1763
      %v1766 = vmul.u32.u64.compose %v1762, %v1757
      %v1767 = vextract.low.u32 %v1766
      %v1768 = vextract.high.u32 %v1766
      %v1769 = vmul.u32 %v1762, %v1753
      %v1770 = vadd.s32 %v1765, %v1767
      %vm1771 = vc.u32 %v1765, %v1767
      %v1772 = vadd.s32 %v1768, 1
      %v1773 = vsel %vm1771, %v1772, %v1768
      %v1774 = vadd.s32 %v1769, %v1773
      %v1775 = vadd.s32 %v1774, 536870912
      %v1776 = vshrl.u32 %v1775, 30
      %v1777 = vshll.u32 %v1776, 30
      %v1778 = vsub.s32 %v1774, %v1777
      %vm1779 = vcmp.lt.s32.totalorder %v1778, 0
      %v1780 = vsub.s32 0, %v1778
      %v1781 = vsel %vm1779, %v1780, %v1778
      %v1782 = vclz %v1781
      %v1783 = vsub.s32 %v1782, 2
      %vm1784 = vcmp.gt.s32.totalorder 0, %v1783
      %v1785 = vsel %vm1784, 0, %v1783
      %v1786 = vsub.s32 32, %v1785
      %v1787 = vshll.u32 %v1778, %v1785
      %v1788 = vshrl.u32 %v1770, %v1786
      %v1789 = vor.u32 %v1787, %v1788
      %v1790 = vsub.s32 4294967266, %v1785
      %v1791 = vadd.s32 %v1790, 127
      %v1792 = vshll.u32 %v1791, 23
      %v1793 = vor.u32 4788187, %v1792
      %v1794 = vand.u32 2147483647, %v1793
      %v1796 = vcvt.s32.f32 %v1789
      %v1797 = vmul.f32 %v1796, %v1794
      %v1798 = vxor.u32 %v1797, 2147483648
      %v1799 = vsel %vm1716, %v1798, %v1797
      %v1800 = vsub.s32 4, %v1776
      %v1801 = vsel %vm1716, %v1800, %v1776
      %v1802 = vsel %vm1715, %v983, %v1799
      %v1803 = vsel %vm1715, 0, %v1801
      %v1804 = vcosq.f32.pop %v1802
      %v1805 = vsinq.f32.pop %v1802
      %vm1806 = vweird.f32 %v983
      %v1807 = vadd.s32 %v1803, 3
      %v1808 = vand.u32 %v1807, 3
      %vm1809 = vcmp.lt.s32.totalorder %v1808, 2
      %vm1810 = vcmp.eq.s32.totalorder %v1808, 0
      %v1811 = vxor.u32 %v1805, 2147483648
      %v1812 = vsel %vm1810, %v1804, %v1811
      %vm1813 = vcmp.eq.s32.totalorder %v1808, 2
      %v1814 = vxor.u32 %v1804, 2147483648
      %v1815 = vsel %vm1813, %v1814, %v1805
      %v1816 = vsel %vm1809, %v1812, %v1815
      %v1817 = vsel %vm1806, nan, %v1816
      %v1818 = vld [vmem:[%s2] sm:$0xff]
      %v1819 = vld [vmem:[%s2 + $0x8] sm:$0xff]
      %v1820 = vld [vmem:[%s2 + $0x10] sm:$0xff]
      %v1821 = vld [vmem:[%s2 + $0x18] sm:$0xff]
      %v1822 = vld [vmem:[%s2 + $0x20] sm:$0xff]
      %v1823 = vld [vmem:[%s2 + $0x28] sm:$0xff]
      %v1824 = vld [vmem:[%s2 + $0x30] sm:$0xff]
      %v1825 = vld [vmem:[%s2 + $0x38] sm:$0xff]
      %v1826 = vld [vmem:[%s2 + $0x40] sm:$0xff]
      %v1827 = vld [vmem:[%s2 + $0x48] sm:$0xff]
      %v1828 = vld [vmem:[%s2 + $0x50] sm:$0xff]
      %v1829 = vld [vmem:[%s2 + $0x58] sm:$0xff]
      %v1830 = vld [vmem:[%s2 + $0x60] sm:$0xff]
      %v1831 = vld [vmem:[%s2 + $0x68] sm:$0xff]
      %v1832 = vld [vmem:[%s2 + $0x70] sm:$0xff]
      %v1833 = vld [vmem:[%s2 + $0x78] sm:$0xff]
      %v1834 = vld [vmem:[%s3] sm:$0x1]
      %v1836 = vlaneseq
      %v1837 = vshrl.u32 %v1836, 7
      %v1838 = vsub.s32 0, %v1837
      %v1839 = vrot.slane %v1834, %v1838
      %1841 = vmatprep.subr.mxu0 0.0
      %v1842 = vand.u32 %v1833, 4294901760
      %1843 = vmatpush1.msra.mxu0 %v1842
      %1844 = vmatprep.subr.mxu0 0.0
      %v1845 = vand.u32 %v1832, 4294901760
      %1846 = vmatpush1.msra.mxu0 %v1845
      %1847 = vmatprep.subr.mxu0 0.0
      %v1848 = vand.u32 %v1831, 4294901760
      %1849 = vmatpush1.msra.mxu0 %v1848
      %1850 = vmatprep.subr.mxu0 0.0
      %v1851 = vand.u32 %v1830, 4294901760
      %1852 = vmatpush1.msra.mxu0 %v1851
      %1853 = vmatprep.subr.mxu0 0.0
      %v1854 = vand.u32 %v1829, 4294901760
      %1855 = vmatpush1.msra.mxu0 %v1854
      %1856 = vmatprep.subr.mxu0 0.0
      %v1857 = vand.u32 %v1828, 4294901760
      %1858 = vmatpush1.msra.mxu0 %v1857
      %1859 = vmatprep.subr.mxu0 0.0
      %v1860 = vand.u32 %v1827, 4294901760
      %1861 = vmatpush1.msra.mxu0 %v1860
      %1862 = vmatprep.subr.mxu0 0.0
      %v1863 = vand.u32 %v1826, 4294901760
      %1864 = vmatpush1.msra.mxu0 %v1863
      %1865 = vmatprep.subr.mxu0 0.0
      %v1866 = vand.u32 %v1825, 4294901760
      %1867 = vmatpush1.msra.mxu0 %v1866
      %1868 = vmatprep.subr.mxu0 0.0
      %v1869 = vand.u32 %v1824, 4294901760
      %1870 = vmatpush1.msra.mxu0 %v1869
      %1871 = vmatprep.subr.mxu0 0.0
      %v1872 = vand.u32 %v1823, 4294901760
      %1873 = vmatpush1.msra.mxu0 %v1872
      %1874 = vmatprep.subr.mxu0 0.0
      %v1875 = vand.u32 %v1822, 4294901760
      %1876 = vmatpush1.msra.mxu0 %v1875
      %1877 = vmatprep.subr.mxu0 0.0
      %v1878 = vand.u32 %v1821, 4294901760
      %1879 = vmatpush1.msra.mxu0 %v1878
      %1880 = vmatprep.subr.mxu0 0.0
      %v1881 = vand.u32 %v1820, 4294901760
      %1882 = vmatpush1.msra.mxu0 %v1881
      %1883 = vmatprep.subr.mxu0 0.0
      %v1884 = vand.u32 %v1819, 4294901760
      %1885 = vmatpush1.msra.mxu0 %v1884
      %1886 = vmatprep.subr.mxu0 0.0
      %v1887 = vand.u32 %v1818, 4294901760
      %1888 = vmatpush1.msra.mxu0 %v1887
      %1889 = vmatprep.subr.mxu0 0.0
      %1890 = vmatpush2.msra.mxu0 0.0
      %1891 = vmatprep.subr.mxu0 0.0
      %1892 = vmatpush2.msra.mxu0 0.0
      %1893 = vmatprep.subr.mxu0 0.0
      %1894 = vmatpush2.msra.mxu0 0.0
      %1895 = vmatprep.subr.mxu0 0.0
      %1896 = vmatpush2.msra.mxu0 0.0
      %1897 = vmatprep.subr.mxu0 0.0
      %1898 = vmatpush2.msra.mxu0 0.0
      %1899 = vmatprep.subr.mxu0 0.0
      %1900 = vmatpush2.msra.mxu0 0.0
      %1901 = vmatprep.subr.mxu0 0.0
      %1902 = vmatpush2.msra.mxu0 0.0
      %1903 = vmatprep.subr.mxu0 0.0
      %1904 = vmatpush2.msra.mxu0 0.0
      %1905 = vmatprep.subr.mxu0 0.0
      %1906 = vmatpush2.msra.mxu0 0.0
      %1907 = vmatprep.subr.mxu0 0.0
      %1908 = vmatpush2.msra.mxu0 0.0
      %1909 = vmatprep.subr.mxu0 0.0
      %1910 = vmatpush2.msra.mxu0 0.0
      %1911 = vmatprep.subr.mxu0 0.0
      %1912 = vmatpush2.msra.mxu0 0.0
      %1913 = vmatprep.subr.mxu0 0.0
      %1914 = vmatpush2.msra.mxu0 0.0
      %1915 = vmatprep.subr.mxu0 0.0
      %1916 = vmatpush2.msra.mxu0 0.0
      %1917 = vmatprep.subr.mxu0 0.0
      %1918 = vmatpush2.msra.mxu0 0.0
      %1919 = vmatprep.subr.mxu0 0.0
      %1920 = vmatpush2.msra.mxu0 0.0
      %1921 = vmatprep.mubr.f32.mxu0 0.0
      %v1922 = vand.u32 %v1089, 4294901760
      %v1923 = vsub.f32 %v1089, %v1922
      %v1924 = vand.u32 %v1923, 4294901760
      %v1925 = vsub.f32 %v1923, %v1924
      %v1926 = vand.u32 %v1925, 4294901760
      %1927 = vmatmul.mubr.f32.gmra.mxu0 %v1926
      %v1928 = vpop.f32.mrf.mxu0
      %v1929 = vadd.f32 %v1839, %v1928
      %v1930 = vpop.f32.mrf.mxu0
      %1931 = vmatprep.mubr.f32.mxu0 0.0
      %v1932 = vand.u32 %v1193, 4294901760
      %v1933 = vsub.f32 %v1193, %v1932
      %v1934 = vand.u32 %v1933, 4294901760
      %v1935 = vsub.f32 %v1933, %v1934
      %v1936 = vand.u32 %v1935, 4294901760
      %1937 = vmatmul.mubr.f32.gmra.mxu0 %v1936
      %v1938 = vpop.f32.mrf.mxu0
      %v1939 = vadd.f32 %v1839, %v1938
      %v1940 = vpop.f32.mrf.mxu0
      %1941 = vmatprep.mubr.f32.mxu0 0.0
      %v1942 = vand.u32 %v1297, 4294901760
      %v1943 = vsub.f32 %v1297, %v1942
      %v1944 = vand.u32 %v1943, 4294901760
      %v1945 = vsub.f32 %v1943, %v1944
      %v1946 = vand.u32 %v1945, 4294901760
      %1947 = vmatmul.mubr.f32.gmra.mxu0 %v1946
      %v1948 = vpop.f32.mrf.mxu0
      %v1949 = vadd.f32 %v1839, %v1948
      %v1950 = vpop.f32.mrf.mxu0
      %1951 = vmatprep.mubr.f32.mxu0 0.0
      %v1952 = vand.u32 %v1401, 4294901760
      %v1953 = vsub.f32 %v1401, %v1952
      %v1954 = vand.u32 %v1953, 4294901760
      %v1955 = vsub.f32 %v1953, %v1954
      %v1956 = vand.u32 %v1955, 4294901760
      %1957 = vmatmul.mubr.f32.gmra.mxu0 %v1956
      %v1958 = vpop.f32.mrf.mxu0
      %v1959 = vadd.f32 %v1839, %v1958
      %v1960 = vpop.f32.mrf.mxu0
      %1961 = vmatprep.mubr.f32.mxu0 0.0
      %v1962 = vand.u32 %v1505, 4294901760
      %v1963 = vsub.f32 %v1505, %v1962
      %v1964 = vand.u32 %v1963, 4294901760
      %v1965 = vsub.f32 %v1963, %v1964
      %v1966 = vand.u32 %v1965, 4294901760
      %1967 = vmatmul.mubr.f32.gmra.mxu0 %v1966
      %v1968 = vpop.f32.mrf.mxu0
      %v1969 = vadd.f32 %v1839, %v1968
      %v1970 = vpop.f32.mrf.mxu0
      %1971 = vmatprep.mubr.f32.mxu0 0.0
      %v1972 = vand.u32 %v1609, 4294901760
      %v1973 = vsub.f32 %v1609, %v1972
      %v1974 = vand.u32 %v1973, 4294901760
      %v1975 = vsub.f32 %v1973, %v1974
      %v1976 = vand.u32 %v1975, 4294901760
      %1977 = vmatmul.mubr.f32.gmra.mxu0 %v1976
      %v1978 = vpop.f32.mrf.mxu0
      %v1979 = vadd.f32 %v1839, %v1978
      %v1980 = vpop.f32.mrf.mxu0
      %1981 = vmatprep.mubr.f32.mxu0 0.0
      %v1982 = vand.u32 %v1713, 4294901760
      %v1983 = vsub.f32 %v1713, %v1982
      %v1984 = vand.u32 %v1983, 4294901760
      %v1985 = vsub.f32 %v1983, %v1984
      %v1986 = vand.u32 %v1985, 4294901760
      %1987 = vmatmul.mubr.f32.gmra.mxu0 %v1986
      %v1988 = vpop.f32.mrf.mxu0
      %v1989 = vadd.f32 %v1839, %v1988
      %v1990 = vpop.f32.mrf.mxu0
      %1991 = vmatprep.mubr.f32.mxu0 0.0
      %v1992 = vand.u32 %v1817, 4294901760
      %v1993 = vsub.f32 %v1817, %v1992
      %v1994 = vand.u32 %v1993, 4294901760
      %v1995 = vsub.f32 %v1993, %v1994
      %v1996 = vand.u32 %v1995, 4294901760
      %1997 = vmatmul.mubr.f32.gmra.mxu0 %v1996
      %v1998 = vpop.f32.mrf.mxu0
      %v1999 = vadd.f32 %v1839, %v1998
      %v2000 = vpop.f32.mrf.mxu0
      %2001 = vdwg.mxu0
      %2002 = vmatprep.subr.mxu0 0.0
      %v2003 = vand.u32 %v1833, 4294901760
      %v2004 = vsub.f32 %v1833, %v2003
      %v2005 = vand.u32 %v2004, 4294901760
      %v2006 = vsub.f32 %v2004, %v2005
      %v2007 = vand.u32 %v2006, 4294901760
      %2008 = vmatpush1.msra.mxu0 %v2007
      %2009 = vmatprep.subr.mxu0 0.0
      %v2010 = vand.u32 %v1832, 4294901760
      %v2011 = vsub.f32 %v1832, %v2010
      %v2012 = vand.u32 %v2011, 4294901760
      %v2013 = vsub.f32 %v2011, %v2012
      %v2014 = vand.u32 %v2013, 4294901760
      %2015 = vmatpush1.msra.mxu0 %v2014
      %2016 = vmatprep.subr.mxu0 0.0
      %v2017 = vand.u32 %v1831, 4294901760
      %v2018 = vsub.f32 %v1831, %v2017
      %v2019 = vand.u32 %v2018, 4294901760
      %v2020 = vsub.f32 %v2018, %v2019
      %v2021 = vand.u32 %v2020, 4294901760
      %2022 = vmatpush1.msra.mxu0 %v2021
      %2023 = vmatprep.subr.mxu0 0.0
      %v2024 = vand.u32 %v1830, 4294901760
      %v2025 = vsub.f32 %v1830, %v2024
      %v2026 = vand.u32 %v2025, 4294901760
      %v2027 = vsub.f32 %v2025, %v2026
      %v2028 = vand.u32 %v2027, 4294901760
      %2029 = vmatpush1.msra.mxu0 %v2028
      %2030 = vmatprep.subr.mxu0 0.0
      %v2031 = vand.u32 %v1829, 4294901760
      %v2032 = vsub.f32 %v1829, %v2031
      %v2033 = vand.u32 %v2032, 4294901760
      %v2034 = vsub.f32 %v2032, %v2033
      %v2035 = vand.u32 %v2034, 4294901760
      %2036 = vmatpush1.msra.mxu0 %v2035
      %2037 = vmatprep.subr.mxu0 0.0
      %v2038 = vand.u32 %v1828, 4294901760
      %v2039 = vsub.f32 %v1828, %v2038
      %v2040 = vand.u32 %v2039, 4294901760
      %v2041 = vsub.f32 %v2039, %v2040
      %v2042 = vand.u32 %v2041, 4294901760
      %2043 = vmatpush1.msra.mxu0 %v2042
      %2044 = vmatprep.subr.mxu0 0.0
      %v2045 = vand.u32 %v1827, 4294901760
      %v2046 = vsub.f32 %v1827, %v2045
      %v2047 = vand.u32 %v2046, 4294901760
      %v2048 = vsub.f32 %v2046, %v2047
      %v2049 = vand.u32 %v2048, 4294901760
      %2050 = vmatpush1.msra.mxu0 %v2049
      %2051 = vmatprep.subr.mxu0 0.0
      %v2052 = vand.u32 %v1826, 4294901760
      %v2053 = vsub.f32 %v1826, %v2052
      %v2054 = vand.u32 %v2053, 4294901760
      %v2055 = vsub.f32 %v2053, %v2054
      %v2056 = vand.u32 %v2055, 4294901760
      %2057 = vmatpush1.msra.mxu0 %v2056
      %2058 = vmatprep.subr.mxu0 0.0
      %v2059 = vand.u32 %v1825, 4294901760
      %v2060 = vsub.f32 %v1825, %v2059
      %v2061 = vand.u32 %v2060, 4294901760
      %v2062 = vsub.f32 %v2060, %v2061
      %v2063 = vand.u32 %v2062, 4294901760
      %2064 = vmatpush1.msra.mxu0 %v2063
      %2065 = vmatprep.subr.mxu0 0.0
      %v2066 = vand.u32 %v1824, 4294901760
      %v2067 = vsub.f32 %v1824, %v2066
      %v2068 = vand.u32 %v2067, 4294901760
      %v2069 = vsub.f32 %v2067, %v2068
      %v2070 = vand.u32 %v2069, 4294901760
      %2071 = vmatpush1.msra.mxu0 %v2070
      %2072 = vmatprep.subr.mxu0 0.0
      %v2073 = vand.u32 %v1823, 4294901760
      %v2074 = vsub.f32 %v1823, %v2073
      %v2075 = vand.u32 %v2074, 4294901760
      %v2076 = vsub.f32 %v2074, %v2075
      %v2077 = vand.u32 %v2076, 4294901760
      %2078 = vmatpush1.msra.mxu0 %v2077
      %2079 = vmatprep.subr.mxu0 0.0
      %v2080 = vand.u32 %v1822, 4294901760
      %v2081 = vsub.f32 %v1822, %v2080
      %v2082 = vand.u32 %v2081, 4294901760
      %v2083 = vsub.f32 %v2081, %v2082
      %v2084 = vand.u32 %v2083, 4294901760
      %2085 = vmatpush1.msra.mxu0 %v2084
      %2086 = vmatprep.subr.mxu0 0.0
      %v2087 = vand.u32 %v1821, 4294901760
      %v2088 = vsub.f32 %v1821, %v2087
      %v2089 = vand.u32 %v2088, 4294901760
      %v2090 = vsub.f32 %v2088, %v2089
      %v2091 = vand.u32 %v2090, 4294901760
      %2092 = vmatpush1.msra.mxu0 %v2091
      %2093 = vmatprep.subr.mxu0 0.0
      %v2094 = vand.u32 %v1820, 4294901760
      %v2095 = vsub.f32 %v1820, %v2094
      %v2096 = vand.u32 %v2095, 4294901760
      %v2097 = vsub.f32 %v2095, %v2096
      %v2098 = vand.u32 %v2097, 4294901760
      %2099 = vmatpush1.msra.mxu0 %v2098
      %2100 = vmatprep.subr.mxu0 0.0
      %v2101 = vand.u32 %v1819, 4294901760
      %v2102 = vsub.f32 %v1819, %v2101
      %v2103 = vand.u32 %v2102, 4294901760
      %v2104 = vsub.f32 %v2102, %v2103
      %v2105 = vand.u32 %v2104, 4294901760
      %2106 = vmatpush1.msra.mxu0 %v2105
      %2107 = vmatprep.subr.mxu0 0.0
      %v2108 = vand.u32 %v1818, 4294901760
      %v2109 = vsub.f32 %v1818, %v2108
      %v2110 = vand.u32 %v2109, 4294901760
      %v2111 = vsub.f32 %v2109, %v2110
      %v2112 = vand.u32 %v2111, 4294901760
      %2113 = vmatpush1.msra.mxu0 %v2112
      %2114 = vmatprep.subr.mxu0 0.0
      %2115 = vmatpush2.msra.mxu0 0.0
      %2116 = vmatprep.subr.mxu0 0.0
      %2117 = vmatpush2.msra.mxu0 0.0
      %2118 = vmatprep.subr.mxu0 0.0
      %2119 = vmatpush2.msra.mxu0 0.0
      %2120 = vmatprep.subr.mxu0 0.0
      %2121 = vmatpush2.msra.mxu0 0.0
      %2122 = vmatprep.subr.mxu0 0.0
      %2123 = vmatpush2.msra.mxu0 0.0
      %2124 = vmatprep.subr.mxu0 0.0
      %2125 = vmatpush2.msra.mxu0 0.0
      %2126 = vmatprep.subr.mxu0 0.0
      %2127 = vmatpush2.msra.mxu0 0.0
      %2128 = vmatprep.subr.mxu0 0.0
      %2129 = vmatpush2.msra.mxu0 0.0
      %2130 = vmatprep.subr.mxu0 0.0
      %2131 = vmatpush2.msra.mxu0 0.0
      %2132 = vmatprep.subr.mxu0 0.0
      %2133 = vmatpush2.msra.mxu0 0.0
      %2134 = vmatprep.subr.mxu0 0.0
      %2135 = vmatpush2.msra.mxu0 0.0
      %2136 = vmatprep.subr.mxu0 0.0
      %2137 = vmatpush2.msra.mxu0 0.0
      %2138 = vmatprep.subr.mxu0 0.0
      %2139 = vmatpush2.msra.mxu0 0.0
      %2140 = vmatprep.subr.mxu0 0.0
      %2141 = vmatpush2.msra.mxu0 0.0
      %2142 = vmatprep.subr.mxu0 0.0
      %2143 = vmatpush2.msra.mxu0 0.0
      %2144 = vmatprep.subr.mxu0 0.0
      %2145 = vmatpush2.msra.mxu0 0.0
      %2146 = vmatprep.mubr.f32.mxu0 0.0
      %v2147 = vand.u32 %v1089, 4294901760
      %2148 = vmatmul.mubr.f32.gmra.mxu0 %v2147
      %v2149 = vpop.f32.mrf.mxu0
      %v2150 = vadd.f32 %v1929, %v2149
      %v2151 = vpop.f32.mrf.mxu0
      %2152 = vmatprep.mubr.f32.mxu0 0.0
      %v2153 = vand.u32 %v1193, 4294901760
      %2154 = vmatmul.mubr.f32.gmra.mxu0 %v2153
      %v2155 = vpop.f32.mrf.mxu0
      %v2156 = vadd.f32 %v1939, %v2155
      %v2157 = vpop.f32.mrf.mxu0
      %2158 = vmatprep.mubr.f32.mxu0 0.0
      %v2159 = vand.u32 %v1297, 4294901760
      %2160 = vmatmul.mubr.f32.gmra.mxu0 %v2159
      %v2161 = vpop.f32.mrf.mxu0
      %v2162 = vadd.f32 %v1949, %v2161
      %v2163 = vpop.f32.mrf.mxu0
      %2164 = vmatprep.mubr.f32.mxu0 0.0
      %v2165 = vand.u32 %v1401, 4294901760
      %2166 = vmatmul.mubr.f32.gmra.mxu0 %v2165
      %v2167 = vpop.f32.mrf.mxu0
      %v2168 = vadd.f32 %v1959, %v2167
      %v2169 = vpop.f32.mrf.mxu0
      %2170 = vmatprep.mubr.f32.mxu0 0.0
      %v2171 = vand.u32 %v1505, 4294901760
      %2172 = vmatmul.mubr.f32.gmra.mxu0 %v2171
      %v2173 = vpop.f32.mrf.mxu0
      %v2174 = vadd.f32 %v1969, %v2173
      %v2175 = vpop.f32.mrf.mxu0
      %2176 = vmatprep.mubr.f32.mxu0 0.0
      %v2177 = vand.u32 %v1609, 4294901760
      %2178 = vmatmul.mubr.f32.gmra.mxu0 %v2177
      %v2179 = vpop.f32.mrf.mxu0
      %v2180 = vadd.f32 %v1979, %v2179
      %v2181 = vpop.f32.mrf.mxu0
      %2182 = vmatprep.mubr.f32.mxu0 0.0
      %v2183 = vand.u32 %v1713, 4294901760
      %2184 = vmatmul.mubr.f32.gmra.mxu0 %v2183
      %v2185 = vpop.f32.mrf.mxu0
      %v2186 = vadd.f32 %v1989, %v2185
      %v2187 = vpop.f32.mrf.mxu0
      %2188 = vmatprep.mubr.f32.mxu0 0.0
      %v2189 = vand.u32 %v1817, 4294901760
      %2190 = vmatmul.mubr.f32.gmra.mxu0 %v2189
      %v2191 = vpop.f32.mrf.mxu0
      %v2192 = vadd.f32 %v1999, %v2191
      %v2193 = vpop.f32.mrf.mxu0
      %2194 = vdwg.mxu0
      %2195 = vmatprep.subr.mxu0 0.0
      %v2196 = vand.u32 %v1833, 4294901760
      %v2197 = vsub.f32 %v1833, %v2196
      %2198 = vmatpush1.msra.mxu0 %v2197
      %2199 = vmatprep.subr.mxu0 0.0
      %v2200 = vand.u32 %v1832, 4294901760
      %v2201 = vsub.f32 %v1832, %v2200
      %2202 = vmatpush1.msra.mxu0 %v2201
      %2203 = vmatprep.subr.mxu0 0.0
      %v2204 = vand.u32 %v1831, 4294901760
      %v2205 = vsub.f32 %v1831, %v2204
      %2206 = vmatpush1.msra.mxu0 %v2205
      %2207 = vmatprep.subr.mxu0 0.0
      %v2208 = vand.u32 %v1830, 4294901760
      %v2209 = vsub.f32 %v1830, %v2208
      %2210 = vmatpush1.msra.mxu0 %v2209
      %2211 = vmatprep.subr.mxu0 0.0
      %v2212 = vand.u32 %v1829, 4294901760
      %v2213 = vsub.f32 %v1829, %v2212
      %2214 = vmatpush1.msra.mxu0 %v2213
      %2215 = vmatprep.subr.mxu0 0.0
      %v2216 = vand.u32 %v1828, 4294901760
      %v2217 = vsub.f32 %v1828, %v2216
      %2218 = vmatpush1.msra.mxu0 %v2217
      %2219 = vmatprep.subr.mxu0 0.0
      %v2220 = vand.u32 %v1827, 4294901760
      %v2221 = vsub.f32 %v1827, %v2220
      %2222 = vmatpush1.msra.mxu0 %v2221
      %2223 = vmatprep.subr.mxu0 0.0
      %v2224 = vand.u32 %v1826, 4294901760
      %v2225 = vsub.f32 %v1826, %v2224
      %2226 = vmatpush1.msra.mxu0 %v2225
      %2227 = vmatprep.subr.mxu0 0.0
      %v2228 = vand.u32 %v1825, 4294901760
      %v2229 = vsub.f32 %v1825, %v2228
      %2230 = vmatpush1.msra.mxu0 %v2229
      %2231 = vmatprep.subr.mxu0 0.0
      %v2232 = vand.u32 %v1824, 4294901760
      %v2233 = vsub.f32 %v1824, %v2232
      %2234 = vmatpush1.msra.mxu0 %v2233
      %2235 = vmatprep.subr.mxu0 0.0
      %v2236 = vand.u32 %v1823, 4294901760
      %v2237 = vsub.f32 %v1823, %v2236
      %2238 = vmatpush1.msra.mxu0 %v2237
      %2239 = vmatprep.subr.mxu0 0.0
      %v2240 = vand.u32 %v1822, 4294901760
      %v2241 = vsub.f32 %v1822, %v2240
      %2242 = vmatpush1.msra.mxu0 %v2241
      %2243 = vmatprep.subr.mxu0 0.0
      %v2244 = vand.u32 %v1821, 4294901760
      %v2245 = vsub.f32 %v1821, %v2244
      %2246 = vmatpush1.msra.mxu0 %v2245
      %2247 = vmatprep.subr.mxu0 0.0
      %v2248 = vand.u32 %v1820, 4294901760
      %v2249 = vsub.f32 %v1820, %v2248
      %2250 = vmatpush1.msra.mxu0 %v2249
      %2251 = vmatprep.subr.mxu0 0.0
      %v2252 = vand.u32 %v1819, 4294901760
      %v2253 = vsub.f32 %v1819, %v2252
      %2254 = vmatpush1.msra.mxu0 %v2253
      %2255 = vmatprep.subr.mxu0 0.0
      %v2256 = vand.u32 %v1818, 4294901760
      %v2257 = vsub.f32 %v1818, %v2256
      %2258 = vmatpush1.msra.mxu0 %v2257
      %2259 = vmatprep.subr.mxu0 0.0
      %2260 = vmatpush2.msra.mxu0 0.0
      %2261 = vmatprep.subr.mxu0 0.0
      %2262 = vmatpush2.msra.mxu0 0.0
      %2263 = vmatprep.subr.mxu0 0.0
      %2264 = vmatpush2.msra.mxu0 0.0
      %2265 = vmatprep.subr.mxu0 0.0
      %2266 = vmatpush2.msra.mxu0 0.0
      %2267 = vmatprep.subr.mxu0 0.0
      %2268 = vmatpush2.msra.mxu0 0.0
      %2269 = vmatprep.subr.mxu0 0.0
      %2270 = vmatpush2.msra.mxu0 0.0
      %2271 = vmatprep.subr.mxu0 0.0
      %2272 = vmatpush2.msra.mxu0 0.0
      %2273 = vmatprep.subr.mxu0 0.0
      %2274 = vmatpush2.msra.mxu0 0.0
      %2275 = vmatprep.subr.mxu0 0.0
      %2276 = vmatpush2.msra.mxu0 0.0
      %2277 = vmatprep.subr.mxu0 0.0
      %2278 = vmatpush2.msra.mxu0 0.0
      %2279 = vmatprep.subr.mxu0 0.0
      %2280 = vmatpush2.msra.mxu0 0.0
      %2281 = vmatprep.subr.mxu0 0.0
      %2282 = vmatpush2.msra.mxu0 0.0
      %2283 = vmatprep.subr.mxu0 0.0
      %2284 = vmatpush2.msra.mxu0 0.0
      %2285 = vmatprep.subr.mxu0 0.0
      %2286 = vmatpush2.msra.mxu0 0.0
      %2287 = vmatprep.subr.mxu0 0.0
      %2288 = vmatpush2.msra.mxu0 0.0
      %2289 = vmatprep.subr.mxu0 0.0
      %2290 = vmatpush2.msra.mxu0 0.0
      %2291 = vmatprep.mubr.f32.mxu0 0.0
      %v2292 = vand.u32 %v1089, 4294901760
      %v2293 = vsub.f32 %v1089, %v2292
      %2294 = vmatmul.mubr.f32.gmra.mxu0 %v2293
      %v2295 = vpop.f32.mrf.mxu0
      %v2296 = vadd.f32 %v2150, %v2295
      %v2297 = vpop.f32.mrf.mxu0
      %2298 = vmatprep.mubr.f32.mxu0 0.0
      %v2299 = vand.u32 %v1193, 4294901760
      %v2300 = vsub.f32 %v1193, %v2299
      %2301 = vmatmul.mubr.f32.gmra.mxu0 %v2300
      %v2302 = vpop.f32.mrf.mxu0
      %v2303 = vadd.f32 %v2156, %v2302
      %v2304 = vpop.f32.mrf.mxu0
      %2305 = vmatprep.mubr.f32.mxu0 0.0
      %v2306 = vand.u32 %v1297, 4294901760
      %v2307 = vsub.f32 %v1297, %v2306
      %2308 = vmatmul.mubr.f32.gmra.mxu0 %v2307
      %v2309 = vpop.f32.mrf.mxu0
      %v2310 = vadd.f32 %v2162, %v2309
      %v2311 = vpop.f32.mrf.mxu0
      %2312 = vmatprep.mubr.f32.mxu0 0.0
      %v2313 = vand.u32 %v1401, 4294901760
      %v2314 = vsub.f32 %v1401, %v2313
      %2315 = vmatmul.mubr.f32.gmra.mxu0 %v2314
      %v2316 = vpop.f32.mrf.mxu0
      %v2317 = vadd.f32 %v2168, %v2316
      %v2318 = vpop.f32.mrf.mxu0
      %2319 = vmatprep.mubr.f32.mxu0 0.0
      %v2320 = vand.u32 %v1505, 4294901760
      %v2321 = vsub.f32 %v1505, %v2320
      %2322 = vmatmul.mubr.f32.gmra.mxu0 %v2321
      %v2323 = vpop.f32.mrf.mxu0
      %v2324 = vadd.f32 %v2174, %v2323
      %v2325 = vpop.f32.mrf.mxu0
      %2326 = vmatprep.mubr.f32.mxu0 0.0
      %v2327 = vand.u32 %v1609, 4294901760
      %v2328 = vsub.f32 %v1609, %v2327
      %2329 = vmatmul.mubr.f32.gmra.mxu0 %v2328
      %v2330 = vpop.f32.mrf.mxu0
      %v2331 = vadd.f32 %v2180, %v2330
      %v2332 = vpop.f32.mrf.mxu0
      %2333 = vmatprep.mubr.f32.mxu0 0.0
      %v2334 = vand.u32 %v1713, 4294901760
      %v2335 = vsub.f32 %v1713, %v2334
      %2336 = vmatmul.mubr.f32.gmra.mxu0 %v2335
      %v2337 = vpop.f32.mrf.mxu0
      %v2338 = vadd.f32 %v2186, %v2337
      %v2339 = vpop.f32.mrf.mxu0
      %2340 = vmatprep.mubr.f32.mxu0 0.0
      %v2341 = vand.u32 %v1817, 4294901760
      %v2342 = vsub.f32 %v1817, %v2341
      %2343 = vmatmul.mubr.f32.gmra.mxu0 %v2342
      %v2344 = vpop.f32.mrf.mxu0
      %v2345 = vadd.f32 %v2192, %v2344
      %v2346 = vpop.f32.mrf.mxu0
      %2347 = vdwg.mxu0
      %2348 = vmatprep.subr.mxu0 0.0
      %v2349 = vand.u32 %v1833, 4294901760
      %2350 = vmatpush1.msra.mxu0 %v2349
      %2351 = vmatprep.subr.mxu0 0.0
      %v2352 = vand.u32 %v1832, 4294901760
      %2353 = vmatpush1.msra.mxu0 %v2352
      %2354 = vmatprep.subr.mxu0 0.0
      %v2355 = vand.u32 %v1831, 4294901760
      %2356 = vmatpush1.msra.mxu0 %v2355
      %2357 = vmatprep.subr.mxu0 0.0
      %v2358 = vand.u32 %v1830, 4294901760
      %2359 = vmatpush1.msra.mxu0 %v2358
      %2360 = vmatprep.subr.mxu0 0.0
      %v2361 = vand.u32 %v1829, 4294901760
      %2362 = vmatpush1.msra.mxu0 %v2361
      %2363 = vmatprep.subr.mxu0 0.0
      %v2364 = vand.u32 %v1828, 4294901760
      %2365 = vmatpush1.msra.mxu0 %v2364
      %2366 = vmatprep.subr.mxu0 0.0
      %v2367 = vand.u32 %v1827, 4294901760
      %2368 = vmatpush1.msra.mxu0 %v2367
      %2369 = vmatprep.subr.mxu0 0.0
      %v2370 = vand.u32 %v1826, 4294901760
      %2371 = vmatpush1.msra.mxu0 %v2370
      %2372 = vmatprep.subr.mxu0 0.0
      %v2373 = vand.u32 %v1825, 4294901760
      %2374 = vmatpush1.msra.mxu0 %v2373
      %2375 = vmatprep.subr.mxu0 0.0
      %v2376 = vand.u32 %v1824, 4294901760
      %2377 = vmatpush1.msra.mxu0 %v2376
      %2378 = vmatprep.subr.mxu0 0.0
      %v2379 = vand.u32 %v1823, 4294901760
      %2380 = vmatpush1.msra.mxu0 %v2379
      %2381 = vmatprep.subr.mxu0 0.0
      %v2382 = vand.u32 %v1822, 4294901760
      %2383 = vmatpush1.msra.mxu0 %v2382
      %2384 = vmatprep.subr.mxu0 0.0
      %v2385 = vand.u32 %v1821, 4294901760
      %2386 = vmatpush1.msra.mxu0 %v2385
      %2387 = vmatprep.subr.mxu0 0.0
      %v2388 = vand.u32 %v1820, 4294901760
      %2389 = vmatpush1.msra.mxu0 %v2388
      %2390 = vmatprep.subr.mxu0 0.0
      %v2391 = vand.u32 %v1819, 4294901760
      %2392 = vmatpush1.msra.mxu0 %v2391
      %2393 = vmatprep.subr.mxu0 0.0
      %v2394 = vand.u32 %v1818, 4294901760
      %2395 = vmatpush1.msra.mxu0 %v2394
      %2396 = vmatprep.subr.mxu0 0.0
      %2397 = vmatpush2.msra.mxu0 0.0
      %2398 = vmatprep.subr.mxu0 0.0
      %2399 = vmatpush2.msra.mxu0 0.0
      %2400 = vmatprep.subr.mxu0 0.0
      %2401 = vmatpush2.msra.mxu0 0.0
      %2402 = vmatprep.subr.mxu0 0.0
      %2403 = vmatpush2.msra.mxu0 0.0
      %2404 = vmatprep.subr.mxu0 0.0
      %2405 = vmatpush2.msra.mxu0 0.0
      %2406 = vmatprep.subr.mxu0 0.0
      %2407 = vmatpush2.msra.mxu0 0.0
      %2408 = vmatprep.subr.mxu0 0.0
      %2409 = vmatpush2.msra.mxu0 0.0
      %2410 = vmatprep.subr.mxu0 0.0
      %2411 = vmatpush2.msra.mxu0 0.0
      %2412 = vmatprep.subr.mxu0 0.0
      %2413 = vmatpush2.msra.mxu0 0.0
      %2414 = vmatprep.subr.mxu0 0.0
      %2415 = vmatpush2.msra.mxu0 0.0
      %2416 = vmatprep.subr.mxu0 0.0
      %2417 = vmatpush2.msra.mxu0 0.0
      %2418 = vmatprep.subr.mxu0 0.0
      %2419 = vmatpush2.msra.mxu0 0.0
      %2420 = vmatprep.subr.mxu0 0.0
      %2421 = vmatpush2.msra.mxu0 0.0
      %2422 = vmatprep.subr.mxu0 0.0
      %2423 = vmatpush2.msra.mxu0 0.0
      %2424 = vmatprep.subr.mxu0 0.0
      %2425 = vmatpush2.msra.mxu0 0.0
      %2426 = vmatprep.subr.mxu0 0.0
      %2427 = vmatpush2.msra.mxu0 0.0
      %2428 = vmatprep.mubr.f32.mxu0 0.0
      %v2429 = vand.u32 %v1089, 4294901760
      %v2430 = vsub.f32 %v1089, %v2429
      %v2431 = vand.u32 %v2430, 4294901760
      %2432 = vmatmul.mubr.f32.gmra.mxu0 %v2431
      %v2433 = vpop.f32.mrf.mxu0
      %v2434 = vadd.f32 %v2296, %v2433
      %v2435 = vpop.f32.mrf.mxu0
      %2436 = vmatprep.mubr.f32.mxu0 0.0
      %v2437 = vand.u32 %v1193, 4294901760
      %v2438 = vsub.f32 %v1193, %v2437
      %v2439 = vand.u32 %v2438, 4294901760
      %2440 = vmatmul.mubr.f32.gmra.mxu0 %v2439
      %v2441 = vpop.f32.mrf.mxu0
      %v2442 = vadd.f32 %v2303, %v2441
      %v2443 = vpop.f32.mrf.mxu0
      %2444 = vmatprep.mubr.f32.mxu0 0.0
      %v2445 = vand.u32 %v1297, 4294901760
      %v2446 = vsub.f32 %v1297, %v2445
      %v2447 = vand.u32 %v2446, 4294901760
      %2448 = vmatmul.mubr.f32.gmra.mxu0 %v2447
      %v2449 = vpop.f32.mrf.mxu0
      %v2450 = vadd.f32 %v2310, %v2449
      %v2451 = vpop.f32.mrf.mxu0
      %2452 = vmatprep.mubr.f32.mxu0 0.0
      %v2453 = vand.u32 %v1401, 4294901760
      %v2454 = vsub.f32 %v1401, %v2453
      %v2455 = vand.u32 %v2454, 4294901760
      %2456 = vmatmul.mubr.f32.gmra.mxu0 %v2455
      %v2457 = vpop.f32.mrf.mxu0
      %v2458 = vadd.f32 %v2317, %v2457
      %v2459 = vpop.f32.mrf.mxu0
      %2460 = vmatprep.mubr.f32.mxu0 0.0
      %v2461 = vand.u32 %v1505, 4294901760
      %v2462 = vsub.f32 %v1505, %v2461
      %v2463 = vand.u32 %v2462, 4294901760
      %2464 = vmatmul.mubr.f32.gmra.mxu0 %v2463
      %v2465 = vpop.f32.mrf.mxu0
      %v2466 = vadd.f32 %v2324, %v2465
      %v2467 = vpop.f32.mrf.mxu0
      %2468 = vmatprep.mubr.f32.mxu0 0.0
      %v2469 = vand.u32 %v1609, 4294901760
      %v2470 = vsub.f32 %v1609, %v2469
      %v2471 = vand.u32 %v2470, 4294901760
      %2472 = vmatmul.mubr.f32.gmra.mxu0 %v2471
      %v2473 = vpop.f32.mrf.mxu0
      %v2474 = vadd.f32 %v2331, %v2473
      %v2475 = vpop.f32.mrf.mxu0
      %2476 = vmatprep.mubr.f32.mxu0 0.0
      %v2477 = vand.u32 %v1713, 4294901760
      %v2478 = vsub.f32 %v1713, %v2477
      %v2479 = vand.u32 %v2478, 4294901760
      %2480 = vmatmul.mubr.f32.gmra.mxu0 %v2479
      %v2481 = vpop.f32.mrf.mxu0
      %v2482 = vadd.f32 %v2338, %v2481
      %v2483 = vpop.f32.mrf.mxu0
      %2484 = vmatprep.mubr.f32.mxu0 0.0
      %v2485 = vand.u32 %v1817, 4294901760
      %v2486 = vsub.f32 %v1817, %v2485
      %v2487 = vand.u32 %v2486, 4294901760
      %2488 = vmatmul.mubr.f32.gmra.mxu0 %v2487
      %v2489 = vpop.f32.mrf.mxu0
      %v2490 = vadd.f32 %v2345, %v2489
      %v2491 = vpop.f32.mrf.mxu0
      %2492 = vdwg.mxu0
      %2493 = vmatprep.subr.mxu0 0.0
      %v2494 = vand.u32 %v1833, 4294901760
      %v2495 = vsub.f32 %v1833, %v2494
      %v2496 = vand.u32 %v2495, 4294901760
      %2497 = vmatpush1.msra.mxu0 %v2496
      %2498 = vmatprep.subr.mxu0 0.0
      %v2499 = vand.u32 %v1832, 4294901760
      %v2500 = vsub.f32 %v1832, %v2499
      %v2501 = vand.u32 %v2500, 4294901760
      %2502 = vmatpush1.msra.mxu0 %v2501
      %2503 = vmatprep.subr.mxu0 0.0
      %v2504 = vand.u32 %v1831, 4294901760
      %v2505 = vsub.f32 %v1831, %v2504
      %v2506 = vand.u32 %v2505, 4294901760
      %2507 = vmatpush1.msra.mxu0 %v2506
      %2508 = vmatprep.subr.mxu0 0.0
      %v2509 = vand.u32 %v1830, 4294901760
      %v2510 = vsub.f32 %v1830, %v2509
      %v2511 = vand.u32 %v2510, 4294901760
      %2512 = vmatpush1.msra.mxu0 %v2511
      %2513 = vmatprep.subr.mxu0 0.0
      %v2514 = vand.u32 %v1829, 4294901760
      %v2515 = vsub.f32 %v1829, %v2514
      %v2516 = vand.u32 %v2515, 4294901760
      %2517 = vmatpush1.msra.mxu0 %v2516
      %2518 = vmatprep.subr.mxu0 0.0
      %v2519 = vand.u32 %v1828, 4294901760
      %v2520 = vsub.f32 %v1828, %v2519
      %v2521 = vand.u32 %v2520, 4294901760
      %2522 = vmatpush1.msra.mxu0 %v2521
      %2523 = vmatprep.subr.mxu0 0.0
      %v2524 = vand.u32 %v1827, 4294901760
      %v2525 = vsub.f32 %v1827, %v2524
      %v2526 = vand.u32 %v2525, 4294901760
      %2527 = vmatpush1.msra.mxu0 %v2526
      %2528 = vmatprep.subr.mxu0 0.0
      %v2529 = vand.u32 %v1826, 4294901760
      %v2530 = vsub.f32 %v1826, %v2529
      %v2531 = vand.u32 %v2530, 4294901760
      %2532 = vmatpush1.msra.mxu0 %v2531
      %2533 = vmatprep.subr.mxu0 0.0
      %v2534 = vand.u32 %v1825, 4294901760
      %v2535 = vsub.f32 %v1825, %v2534
      %v2536 = vand.u32 %v2535, 4294901760
      %2537 = vmatpush1.msra.mxu0 %v2536
      %2538 = vmatprep.subr.mxu0 0.0
      %v2539 = vand.u32 %v1824, 4294901760
      %v2540 = vsub.f32 %v1824, %v2539
      %v2541 = vand.u32 %v2540, 4294901760
      %2542 = vmatpush1.msra.mxu0 %v2541
      %2543 = vmatprep.subr.mxu0 0.0
      %v2544 = vand.u32 %v1823, 4294901760
      %v2545 = vsub.f32 %v1823, %v2544
      %v2546 = vand.u32 %v2545, 4294901760
      %2547 = vmatpush1.msra.mxu0 %v2546
      %2548 = vmatprep.subr.mxu0 0.0
      %v2549 = vand.u32 %v1822, 4294901760
      %v2550 = vsub.f32 %v1822, %v2549
      %v2551 = vand.u32 %v2550, 4294901760
      %2552 = vmatpush1.msra.mxu0 %v2551
      %2553 = vmatprep.subr.mxu0 0.0
      %v2554 = vand.u32 %v1821, 4294901760
      %v2555 = vsub.f32 %v1821, %v2554
      %v2556 = vand.u32 %v2555, 4294901760
      %2557 = vmatpush1.msra.mxu0 %v2556
      %2558 = vmatprep.subr.mxu0 0.0
      %v2559 = vand.u32 %v1820, 4294901760
      %v2560 = vsub.f32 %v1820, %v2559
      %v2561 = vand.u32 %v2560, 4294901760
      %2562 = vmatpush1.msra.mxu0 %v2561
      %2563 = vmatprep.subr.mxu0 0.0
      %v2564 = vand.u32 %v1819, 4294901760
      %v2565 = vsub.f32 %v1819, %v2564
      %v2566 = vand.u32 %v2565, 4294901760
      %2567 = vmatpush1.msra.mxu0 %v2566
      %2568 = vmatprep.subr.mxu0 0.0
      %v2569 = vand.u32 %v1818, 4294901760
      %v2570 = vsub.f32 %v1818, %v2569
      %v2571 = vand.u32 %v2570, 4294901760
      %2572 = vmatpush1.msra.mxu0 %v2571
      %2573 = vmatprep.subr.mxu0 0.0
      %2574 = vmatpush2.msra.mxu0 0.0
      %2575 = vmatprep.subr.mxu0 0.0
      %2576 = vmatpush2.msra.mxu0 0.0
      %2577 = vmatprep.subr.mxu0 0.0
      %2578 = vmatpush2.msra.mxu0 0.0
      %2579 = vmatprep.subr.mxu0 0.0
      %2580 = vmatpush2.msra.mxu0 0.0
      %2581 = vmatprep.subr.mxu0 0.0
      %2582 = vmatpush2.msra.mxu0 0.0
      %2583 = vmatprep.subr.mxu0 0.0
      %2584 = vmatpush2.msra.mxu0 0.0
      %2585 = vmatprep.subr.mxu0 0.0
      %2586 = vmatpush2.msra.mxu0 0.0
      %2587 = vmatprep.subr.mxu0 0.0
      %2588 = vmatpush2.msra.mxu0 0.0
      %2589 = vmatprep.subr.mxu0 0.0
      %2590 = vmatpush2.msra.mxu0 0.0
      %2591 = vmatprep.subr.mxu0 0.0
      %2592 = vmatpush2.msra.mxu0 0.0
      %2593 = vmatprep.subr.mxu0 0.0
      %2594 = vmatpush2.msra.mxu0 0.0
      %2595 = vmatprep.subr.mxu0 0.0
      %2596 = vmatpush2.msra.mxu0 0.0
      %2597 = vmatprep.subr.mxu0 0.0
      %2598 = vmatpush2.msra.mxu0 0.0
      %2599 = vmatprep.subr.mxu0 0.0
      %2600 = vmatpush2.msra.mxu0 0.0
      %2601 = vmatprep.subr.mxu0 0.0
      %2602 = vmatpush2.msra.mxu0 0.0
      %2603 = vmatprep.subr.mxu0 0.0
      %2604 = vmatpush2.msra.mxu0 0.0
      %2605 = vmatprep.mubr.f32.mxu0 0.0
      %v2606 = vand.u32 %v1089, 4294901760
      %2607 = vmatmul.mubr.f32.gmra.mxu0 %v2606
      %v2608 = vpop.f32.mrf.mxu0
      %v2609 = vadd.f32 %v2434, %v2608
      %v2610 = vpop.f32.mrf.mxu0
      %2611 = vmatprep.mubr.f32.mxu0 0.0
      %v2612 = vand.u32 %v1193, 4294901760
      %2613 = vmatmul.mubr.f32.gmra.mxu0 %v2612
      %v2614 = vpop.f32.mrf.mxu0
      %v2615 = vadd.f32 %v2442, %v2614
      %v2616 = vpop.f32.mrf.mxu0
      %2617 = vmatprep.mubr.f32.mxu0 0.0
      %v2618 = vand.u32 %v1297, 4294901760
      %2619 = vmatmul.mubr.f32.gmra.mxu0 %v2618
      %v2620 = vpop.f32.mrf.mxu0
      %v2621 = vadd.f32 %v2450, %v2620
      %v2622 = vpop.f32.mrf.mxu0
      %2623 = vmatprep.mubr.f32.mxu0 0.0
      %v2624 = vand.u32 %v1401, 4294901760
      %2625 = vmatmul.mubr.f32.gmra.mxu0 %v2624
      %v2626 = vpop.f32.mrf.mxu0
      %v2627 = vadd.f32 %v2458, %v2626
      %v2628 = vpop.f32.mrf.mxu0
      %2629 = vmatprep.mubr.f32.mxu0 0.0
      %v2630 = vand.u32 %v1505, 4294901760
      %2631 = vmatmul.mubr.f32.gmra.mxu0 %v2630
      %v2632 = vpop.f32.mrf.mxu0
      %v2633 = vadd.f32 %v2466, %v2632
      %v2634 = vpop.f32.mrf.mxu0
      %2635 = vmatprep.mubr.f32.mxu0 0.0
      %v2636 = vand.u32 %v1609, 4294901760
      %2637 = vmatmul.mubr.f32.gmra.mxu0 %v2636
      %v2638 = vpop.f32.mrf.mxu0
      %v2639 = vadd.f32 %v2474, %v2638
      %v2640 = vpop.f32.mrf.mxu0
      %2641 = vmatprep.mubr.f32.mxu0 0.0
      %v2642 = vand.u32 %v1713, 4294901760
      %2643 = vmatmul.mubr.f32.gmra.mxu0 %v2642
      %v2644 = vpop.f32.mrf.mxu0
      %v2645 = vadd.f32 %v2482, %v2644
      %v2646 = vpop.f32.mrf.mxu0
      %2647 = vmatprep.mubr.f32.mxu0 0.0
      %v2648 = vand.u32 %v1817, 4294901760
      %2649 = vmatmul.mubr.f32.gmra.mxu0 %v2648
      %v2650 = vpop.f32.mrf.mxu0
      %v2651 = vadd.f32 %v2490, %v2650
      %v2652 = vpop.f32.mrf.mxu0
      %2653 = vdwg.mxu0
      %2654 = vmatprep.subr.mxu0 0.0
      %v2655 = vand.u32 %v1833, 4294901760
      %2656 = vmatpush1.msra.mxu0 %v2655
      %2657 = vmatprep.subr.mxu0 0.0
      %v2658 = vand.u32 %v1832, 4294901760
      %2659 = vmatpush1.msra.mxu0 %v2658
      %2660 = vmatprep.subr.mxu0 0.0
      %v2661 = vand.u32 %v1831, 4294901760
      %2662 = vmatpush1.msra.mxu0 %v2661
      %2663 = vmatprep.subr.mxu0 0.0
      %v2664 = vand.u32 %v1830, 4294901760
      %2665 = vmatpush1.msra.mxu0 %v2664
      %2666 = vmatprep.subr.mxu0 0.0
      %v2667 = vand.u32 %v1829, 4294901760
      %2668 = vmatpush1.msra.mxu0 %v2667
      %2669 = vmatprep.subr.mxu0 0.0
      %v2670 = vand.u32 %v1828, 4294901760
      %2671 = vmatpush1.msra.mxu0 %v2670
      %2672 = vmatprep.subr.mxu0 0.0
      %v2673 = vand.u32 %v1827, 4294901760
      %2674 = vmatpush1.msra.mxu0 %v2673
      %2675 = vmatprep.subr.mxu0 0.0
      %v2676 = vand.u32 %v1826, 4294901760
      %2677 = vmatpush1.msra.mxu0 %v2676
      %2678 = vmatprep.subr.mxu0 0.0
      %v2679 = vand.u32 %v1825, 4294901760
      %2680 = vmatpush1.msra.mxu0 %v2679
      %2681 = vmatprep.subr.mxu0 0.0
      %v2682 = vand.u32 %v1824, 4294901760
      %2683 = vmatpush1.msra.mxu0 %v2682
      %2684 = vmatprep.subr.mxu0 0.0
      %v2685 = vand.u32 %v1823, 4294901760
      %2686 = vmatpush1.msra.mxu0 %v2685
      %2687 = vmatprep.subr.mxu0 0.0
      %v2688 = vand.u32 %v1822, 4294901760
      %2689 = vmatpush1.msra.mxu0 %v2688
      %2690 = vmatprep.subr.mxu0 0.0
      %v2691 = vand.u32 %v1821, 4294901760
      %2692 = vmatpush1.msra.mxu0 %v2691
      %2693 = vmatprep.subr.mxu0 0.0
      %v2694 = vand.u32 %v1820, 4294901760
      %2695 = vmatpush1.msra.mxu0 %v2694
      %2696 = vmatprep.subr.mxu0 0.0
      %v2697 = vand.u32 %v1819, 4294901760
      %2698 = vmatpush1.msra.mxu0 %v2697
      %2699 = vmatprep.subr.mxu0 0.0
      %v2700 = vand.u32 %v1818, 4294901760
      %2701 = vmatpush1.msra.mxu0 %v2700
      %2702 = vmatprep.subr.mxu0 0.0
      %2703 = vmatpush2.msra.mxu0 0.0
      %2704 = vmatprep.subr.mxu0 0.0
      %2705 = vmatpush2.msra.mxu0 0.0
      %2706 = vmatprep.subr.mxu0 0.0
      %2707 = vmatpush2.msra.mxu0 0.0
      %2708 = vmatprep.subr.mxu0 0.0
      %2709 = vmatpush2.msra.mxu0 0.0
      %2710 = vmatprep.subr.mxu0 0.0
      %2711 = vmatpush2.msra.mxu0 0.0
      %2712 = vmatprep.subr.mxu0 0.0
      %2713 = vmatpush2.msra.mxu0 0.0
      %2714 = vmatprep.subr.mxu0 0.0
      %2715 = vmatpush2.msra.mxu0 0.0
      %2716 = vmatprep.subr.mxu0 0.0
      %2717 = vmatpush2.msra.mxu0 0.0
      %2718 = vmatprep.subr.mxu0 0.0
      %2719 = vmatpush2.msra.mxu0 0.0
      %2720 = vmatprep.subr.mxu0 0.0
      %2721 = vmatpush2.msra.mxu0 0.0
      %2722 = vmatprep.subr.mxu0 0.0
      %2723 = vmatpush2.msra.mxu0 0.0
      %2724 = vmatprep.subr.mxu0 0.0
      %2725 = vmatpush2.msra.mxu0 0.0
      %2726 = vmatprep.subr.mxu0 0.0
      %2727 = vmatpush2.msra.mxu0 0.0
      %2728 = vmatprep.subr.mxu0 0.0
      %2729 = vmatpush2.msra.mxu0 0.0
      %2730 = vmatprep.subr.mxu0 0.0
      %2731 = vmatpush2.msra.mxu0 0.0
      %2732 = vmatprep.subr.mxu0 0.0
      %2733 = vmatpush2.msra.mxu0 0.0
      %2734 = vmatprep.mubr.f32.mxu0 0.0
      %v2735 = vand.u32 %v1089, 4294901760
      %2736 = vmatmul.mubr.f32.gmra.mxu0 %v2735
      %v2737 = vpop.f32.mrf.mxu0
      %v2738 = vadd.f32 %v2609, %v2737
      %v2739 = vpop.f32.mrf.mxu0
      %2740 = vmatprep.mubr.f32.mxu0 0.0
      %v2741 = vand.u32 %v1193, 4294901760
      %2742 = vmatmul.mubr.f32.gmra.mxu0 %v2741
      %v2743 = vpop.f32.mrf.mxu0
      %v2744 = vadd.f32 %v2615, %v2743
      %v2745 = vpop.f32.mrf.mxu0
      %2746 = vmatprep.mubr.f32.mxu0 0.0
      %v2747 = vand.u32 %v1297, 4294901760
      %2748 = vmatmul.mubr.f32.gmra.mxu0 %v2747
      %v2749 = vpop.f32.mrf.mxu0
      %v2750 = vadd.f32 %v2621, %v2749
      %v2751 = vpop.f32.mrf.mxu0
      %2752 = vmatprep.mubr.f32.mxu0 0.0
      %v2753 = vand.u32 %v1401, 4294901760
      %2754 = vmatmul.mubr.f32.gmra.mxu0 %v2753
      %v2755 = vpop.f32.mrf.mxu0
      %v2756 = vadd.f32 %v2627, %v2755
      %v2757 = vpop.f32.mrf.mxu0
      %2758 = vmatprep.mubr.f32.mxu0 0.0
      %v2759 = vand.u32 %v1505, 4294901760
      %2760 = vmatmul.mubr.f32.gmra.mxu0 %v2759
      %v2761 = vpop.f32.mrf.mxu0
      %v2762 = vadd.f32 %v2633, %v2761
      %v2763 = vpop.f32.mrf.mxu0
      %2764 = vmatprep.mubr.f32.mxu0 0.0
      %v2765 = vand.u32 %v1609, 4294901760
      %2766 = vmatmul.mubr.f32.gmra.mxu0 %v2765
      %v2767 = vpop.f32.mrf.mxu0
      %v2768 = vadd.f32 %v2639, %v2767
      %v2769 = vpop.f32.mrf.mxu0
      %2770 = vmatprep.mubr.f32.mxu0 0.0
      %v2771 = vand.u32 %v1713, 4294901760
      %2772 = vmatmul.mubr.f32.gmra.mxu0 %v2771
      %v2773 = vpop.f32.mrf.mxu0
      %v2774 = vadd.f32 %v2645, %v2773
      %v2775 = vpop.f32.mrf.mxu0
      %2776 = vmatprep.mubr.f32.mxu0 0.0
      %v2777 = vand.u32 %v1817, 4294901760
      %2778 = vmatmul.mubr.f32.gmra.mxu0 %v2777
      %v2779 = vpop.f32.mrf.mxu0
      %v2780 = vadd.f32 %v2651, %v2779
      %v2781 = vpop.f32.mrf.mxu0
      %2782 = vdwg.mxu0
      %v2783 = vmax.f32 %v2738, 0.0
      %v2784 = vmax.f32 %v2744, 0.0
      %v2785 = vmax.f32 %v2750, 0.0
      %v2786 = vmax.f32 %v2756, 0.0
      %v2787 = vmax.f32 %v2762, 0.0
      %v2788 = vmax.f32 %v2768, 0.0
      %v2789 = vmax.f32 %v2774, 0.0
      %v2790 = vmax.f32 %v2780, 0.0
      %vm2791 = vcmask 261120
      %2792 = vst.msk [vmem:[%s199] sm:$0xff] %vm2791, %v2783
      %2793 = vst.msk [vmem:[%s199 + $0x8] sm:$0xff] %vm2791, %v2784
      %2794 = vst.msk [vmem:[%s199 + $0x10] sm:$0xff] %vm2791, %v2785
      %2795 = vst.msk [vmem:[%s199 + $0x18] sm:$0xff] %vm2791, %v2786
      %2796 = vst.msk [vmem:[%s199 + $0x20] sm:$0xff] %vm2791, %v2787
      %2797 = vst.msk [vmem:[%s199 + $0x28] sm:$0xff] %vm2791, %v2788
      %2798 = vst.msk [vmem:[%s199 + $0x30] sm:$0xff] %vm2791, %v2789
      %2799 = vst.msk [vmem:[%s199 + $0x38] sm:$0xff] %vm2791, %v2790
      %s2800 = smul.u32 8, %s15
      %p2801 = scmp.lt.s32.totalorder %s2800, 15
      %s2802 = scalar_select %p2801, %s2800, 15
      %s2803 = smul.addr %s2802, 8
      %s2804 = scalar_lea.vmem %s4, %s2803
      // Predicated region
      $region37: #{tpu_custom_call.1} parent=35 // pred_check
        %p2805 = pneg %p122
      $region38: #{tpu_custom_call.1} parent=35 // pred_check_branch
        %2807 = sbr.rel (%p2805) target = $region40
      $region39: #{tpu_custom_call.1} parent=35 // pred_region
        %s2808 = smul.u32 8, %s15
      $region40: #{tpu_custom_call.1} parent=35 // pred_fallthru
        _
    $region36: #{tpu_custom_call.1} parent=5 // pred_fallthru
      _
    %p2809 = scmp.le.s32.totalorder 2, %s10
    // Predicated region
    $region41: #{tpu_custom_call.1} parent=5 // pred_check
      %p2810 = pneg %p2809
    $region42: #{tpu_custom_call.1} parent=5 // pred_check_branch
      %2812 = sbr.rel (%p2810) target = $region44
    $region43: #{tpu_custom_call.1} parent=5 // pred_region
      %s2813 = ssub.s32 %s10, 2
      // Predicated region
      $region45: #{tpu_custom_call.1} parent=43 // pred_check
        %p2814 = pneg %p128
      $region46: #{tpu_custom_call.1} parent=43 // pred_check_branch
        %2816 = sbr.rel (%p2814) target = $region48
      $region47: #{tpu_custom_call.1} parent=43 // pred_region
        %s2817 = smul.u32 8, %s16
        %p2818 = scmp.lt.s32.totalorder %s2817, 15
        %s2819 = scalar_select %p2818, %s2817, 15
        %s2820 = smul.addr %s2819, 8
        %s2821 = scalar_lea.vmem %s4, %s2820
      $region48: #{tpu_custom_call.1} parent=43 // pred_fallthru
        _
    $region44: #{tpu_custom_call.1} parent=5 // pred_fallthru
      _
  $region6: #{tpu_custom_call.1} parent=0 // loop_footer
    %s14 = sadd.s32 1, %s10
  $region7: #{tpu_custom_call.1} parent=0 // loop_footer_branch
    %9 = sbr.rel target = $region3
  $region8: #{tpu_custom_call.1} parent=0 // loop_exit
    _

</llo_original>
